<compile_context>
chip_gen: v5e
topology: v5e:2x2
jax: 0.10.0
libtpu: 0.0.40
codegen_flags: <defaults>
</compile_context>

<pallas_src>
import jax
import jax.numpy as jnp
from jax.experimental import pallas as pl
from jax.experimental.pallas import tpu as pltpu

# ---------------- configuration (small, forward-consistent shapes) ----------
B = 2            # batch
CIN = 4          # input channels of x_src
H = W = 16       # spatial
HW = H * W
C = 128          # content / decoder feature channels
STY_DIM = 128    # style code dim
NF_MLP = 256     # self.nf_mlp in BaseGenerator
N_ADAIN = 4 * C  # two AdaIN2d layers, 2*C params each (bias + weight)
C_OUT = 3        # RGB output channels
C_OUT_PAD = 8    # sublane-padded output channel count
EPS = 1e-5


# ---------------- fused kernel (single invocation, batch folded) ------------
def _adain_relu_skip(x, bias, weight, skip):
    """Fused AdaIN (instance norm over spatial) + ReLU + skip add.

    x, skip: (B, HW, C) f32; bias, weight: (B, 1, C) f32.
    One reduction pass (sum and sum-of-squares), then one FMA pass:
      scale = weight * rsqrt(var + eps); shift = bias - mu * scale
      out   = max(x * scale + shift, 0) + skip
    """
    inv_n = 1.0 / x.shape[1]
    mu = jnp.sum(x, axis=1, keepdims=True) * inv_n            # (B, 1, C)
    ex2 = jnp.sum(x * x, axis=1, keepdims=True) * inv_n
    var = jnp.maximum(ex2 - mu * mu, 0.0)                     # clamp cancellation
    scale = weight * jax.lax.rsqrt(var + EPS)
    shift = bias - mu * scale
    return jnp.maximum(x * scale + shift, 0.0) + skip


def generator_kernel(x_ref, s_ref, we_ref, mw1_ref, mw2_ref, mw3_ref,
                     wo_ref, b_ref, bo_ref, o_ref):
    # static shapes derived from the refs
    n, _ = x_ref.shape                 # n = B * HW
    bsz = s_ref.shape[0]
    hw = n // bsz
    c3 = we_ref.shape[1]
    c = c3 // 3
    nf = mw1_ref.shape[1]
    n_adain = mw3_ref.shape[1]

    # packed f32 bias row: [enc(3c) | mb1(nf) | mb2(nf) | mb3(n_adain)]
    be = b_ref[:, 0:c3]
    mb1 = b_ref[:, c3:c3 + nf]
    mb2 = b_ref[:, c3 + nf:c3 + 2 * nf]
    mb3 = b_ref[:, c3 + 2 * nf:c3 + 2 * nf + n_adain]

    # ---- content encoder: packed 1x1 conv (CIN -> 3C) + ReLU, M = B*HW -----
    # (K = CIN is a degenerate MXU contraction but the op is tiny; accepted.)
    enc = jnp.dot(x_ref[...], we_ref[...],
                  preferred_element_type=jnp.float32) + be
    enc = jnp.maximum(enc, 0.0)                               # (B*HW, 3C) f32
    c_src = enc[:, 0 * c:1 * c].reshape(bsz, hw, c)
    skip1 = enc[:, 1 * c:2 * c].reshape(bsz, hw, c)
    skip2 = enc[:, 2 * c:3 * c].reshape(bsz, hw, c)

    # ---- style MLP -> AdaIN params, M = B (bf16 MXU, f32 accumulate) -------
    h = jnp.dot(s_ref[...], mw1_ref[...],
                preferred_element_type=jnp.float32) + mb1
    h = jnp.maximum(h, 0.0).astype(jnp.bfloat16)
    h = jnp.dot(h, mw2_ref[...], preferred_element_type=jnp.float32) + mb2
    h = jnp.maximum(h, 0.0).astype(jnp.bfloat16)
    p = jnp.dot(h, mw3_ref[...], preferred_element_type=jnp.float32) + mb3   # (B, 4C) f32

    # ---- decoder: AdaIN->ReLU->+skip2 -> AdaIN->ReLU->+skip1 ----------------
    d = _adain_relu_skip(c_src, p[:, None, 0 * c:1 * c], p[:, None, 1 * c:2 * c], skip2)
    d = _adain_relu_skip(d,     p[:, None, 2 * c:3 * c], p[:, None, 3 * c:4 * c], skip1)

    # ---- final 1x1 conv, emitted channels-on-sublane / spatial-on-lane ------
    # wo is (8, C) f32; d is transposed once (XLU) so the output (8, B*HW) is
    # lane-dense.  (f32 MXU here: the matmul is tiny and d is already f32.)
    d2 = d.reshape(n, c)
    o_ref[...] = (jnp.dot(wo_ref[...], d2.T,
                          preferred_element_type=jnp.float32) + bo_ref[...])


# ---------------- wrappers ---------------------------------------------------
def init_params(key):
    """Deterministic kaiming-normal-ish init (fan_in, relu gain)."""
    ks = jax.random.split(key, 8)

    def kaiming(k, shape, fan_in):
        return jax.random.normal(k, shape, jnp.float32) * jnp.sqrt(2.0 / fan_in)

    return dict(
        # encoder (1x1 convs)
        wc=kaiming(ks[0], (CIN, C), CIN), bc=jnp.zeros((1, C), jnp.float32),
        w1=kaiming(ks[1], (CIN, C), CIN), b1=jnp.zeros((1, C), jnp.float32),
        w2=kaiming(ks[2], (CIN, C), CIN), b2=jnp.zeros((1, C), jnp.float32),
        # style MLP
        mw1=kaiming(ks[3], (STY_DIM, NF_MLP), STY_DIM), mb1=jnp.zeros((1, NF_MLP), jnp.float32),
        mw2=kaiming(ks[4], (NF_MLP, NF_MLP), NF_MLP),   mb2=jnp.zeros((1, NF_MLP), jnp.float32),
        mw3=kaiming(ks[5], (NF_MLP, N_ADAIN), NF_MLP),  mb3=jnp.zeros((1, N_ADAIN), jnp.float32),
        # decoder output 1x1 conv (C -> 3 RGB channels)
        wo=kaiming(ks[6], (C, C_OUT), C), bo=jnp.zeros((1, C_OUT), jnp.float32),
    )


def base_generator_forward(params, x_src, s_code):
    """x_src: (B, H, W, CIN) NHWC, s_code: (B, STY_DIM) -> out (B, H, W, 3)."""
    b, h, w, cin = x_src.shape
    hw = h * w
    n = b * hw
    bf16, f32 = jnp.bfloat16, jnp.float32

    # activations in bf16 (dots accumulate in f32)
    x_flat = x_src.reshape(n, cin).astype(bf16)
    s = s_code.astype(bf16)

    # pack the three encoder 1x1-conv weights into one (CIN, 3*C) matrix, bf16
    w_enc = jnp.concatenate([params["wc"], params["w1"], params["w2"]], axis=1).astype(bf16)
    b_enc = jnp.concatenate([params["bc"], params["b1"], params["b2"]], axis=1)

    # pack all MLP/encoder bias rows into one (1, 3C + 2*NF + 4C) f32 row
    b_packed = jnp.concatenate(
        [b_enc, params["mb1"], params["mb2"], params["mb3"]], axis=1).astype(f32)

    mw1 = params["mw1"].astype(bf16)
    mw2 = params["mw2"].astype(bf16)
    mw3 = params["mw3"].astype(bf16)

    # output 1x1 conv, sublane-padded to 8 output channels, rows = channels
    c = params["wo"].shape[0]
    wo8 = jnp.zeros((C_OUT_PAD, c), f32).at[:C_OUT, :].set(params["wo"].T)
    bo8 = jnp.zeros((C_OUT_PAD, 1), f32).at[:C_OUT, 0].set(params["bo"][0])

    inputs = (x_flat, s, w_enc, mw1, mw2, mw3, wo8, b_packed, bo8)

    # advisory cost estimate for XLA scheduling around this tiny call
    c3 = w_enc.shape[1]
    nf = mw1.shape[1]
    n_adain = mw3.shape[1]
    flops = 2 * (n * cin * c3
                 + b * (s.shape[1] * nf + nf * nf + nf * n_adain)
                 + n * c * C_OUT_PAD)
    bytes_accessed = (sum(int(a.size) * jnp.dtype(a.dtype).itemsize for a in inputs)
                      + C_OUT_PAD * n * 4)
    cost = pl.CostEstimate(flops=flops, transcendentals=2 * b * c,
                           bytes_accessed=bytes_accessed)

    # single fused invocation, no grid: every operand is one whole-array VMEM
    # block (~0.5 MiB of weights + ~1.3 MiB of intermediates, fits everywhere).
    out = pl.pallas_call(
        generator_kernel,
        out_shape=jax.ShapeDtypeStruct((C_OUT_PAD, n), f32),
        cost_estimate=cost,
    )(*inputs)

    # (8, B*HW) -> (B, H, W, 3)
    return out.reshape(C_OUT_PAD, b, h, w).transpose(1, 2, 3, 0)[..., :C_OUT]


if __name__ == "__main__":
    key = jax.random.PRNGKey(0)
    kx, ks, kp = jax.random.split(key, 3)

    x_src = jax.random.normal(kx, (B, H, W, CIN), jnp.float32)
    s_code = jax.random.normal(ks, (B, STY_DIM), jnp.float32)
    params = init_params(kp)

    fwd = jax.jit(base_generator_forward)
    out = fwd(params, x_src, s_code)
    out = jax.block_until_ready(out)

    assert out.shape == (B, H, W, C_OUT) and out.dtype == jnp.float32
    assert bool(jnp.all(jnp.isfinite(out)))
    print("KERNEL_OK")
</pallas_src>

<mosaic_0001>
module attributes {stable_mosaic.version = 11 : i64} {
  func.func @generator_kernel(%arg0: memref<512x4xbf16, #tpu.memory_space<vmem>>, %arg1: memref<2x128xbf16, #tpu.memory_space<vmem>>, %arg2: memref<4x384xbf16, #tpu.memory_space<vmem>>, %arg3: memref<128x256xbf16, #tpu.memory_space<vmem>>, %arg4: memref<256x256xbf16, #tpu.memory_space<vmem>>, %arg5: memref<256x512xbf16, #tpu.memory_space<vmem>>, %arg6: memref<8x128xf32, #tpu.memory_space<vmem>>, %arg7: memref<1x1408xf32, #tpu.memory_space<vmem>>, %arg8: memref<8x1xf32, #tpu.memory_space<vmem>>, %arg9: memref<8x512xf32, #tpu.memory_space<vmem>>) attributes {dimension_semantics = [], scalar_prefetch = 0 : i64, scratch_operands = 0 : i64, tpu.core_type = #tpu.core_type<tc>} {
    %c0 = arith.constant 0 : index
    %c0_0 = arith.constant 0 : index
    %0 = vector.load %arg7[%c0, %c0_0] : memref<1x1408xf32, #tpu.memory_space<vmem>>, vector<1x384xf32>
    %c0_1 = arith.constant 0 : index
    %c384 = arith.constant 384 : index
    %1 = vector.load %arg7[%c0_1, %c384] : memref<1x1408xf32, #tpu.memory_space<vmem>>, vector<1x256xf32>
    %c0_2 = arith.constant 0 : index
    %c640 = arith.constant 640 : index
    %2 = vector.load %arg7[%c0_2, %c640] : memref<1x1408xf32, #tpu.memory_space<vmem>>, vector<1x256xf32>
    %c0_3 = arith.constant 0 : index
    %c896 = arith.constant 896 : index
    %3 = vector.load %arg7[%c0_3, %c896] : memref<1x1408xf32, #tpu.memory_space<vmem>>, vector<1x512xf32>
    %c0_4 = arith.constant 0 : index
    %c0_5 = arith.constant 0 : index
    %4 = vector.load %arg0[%c0_4, %c0_5] : memref<512x4xbf16, #tpu.memory_space<vmem>>, vector<512x4xbf16>
    %c0_6 = arith.constant 0 : index
    %c0_7 = arith.constant 0 : index
    %5 = vector.load %arg2[%c0_6, %c0_7] : memref<4x384xbf16, #tpu.memory_space<vmem>>, vector<4x384xbf16>
    %cst = arith.constant dense<0.000000e+00> : vector<512x384xf32>
    %6 = tpu.matmul %4, %5, %cst {dimension_numbers = #tpu.dot_dimension_numbers<[1], [0], [0], [1], [0, 0, 1, 1], [], []>} : vector<512x4xbf16>, vector<4x384xbf16>, vector<512x384xf32> -> vector<512x384xf32>
    %7 = vector.broadcast %0 : vector<1x384xf32> to vector<512x384xf32>
    %8 = arith.addf %6, %7 : vector<512x384xf32>
    %cst_8 = arith.constant 0.000000e+00 : f32
    %9 = vector.broadcast %cst_8 : f32 to vector<512x384xf32>
    %10 = arith.maximumf %8, %9 : vector<512x384xf32>
    %11 = vector.extract_strided_slice %10 {offsets = [0, 0], sizes = [512, 128], strides = [1, 1]} : vector<512x384xf32> to vector<512x128xf32>
    %12 = vector.shape_cast %11 : vector<512x128xf32> to vector<2x256x128xf32>
    %13 = vector.extract_strided_slice %10 {offsets = [0, 128], sizes = [512, 128], strides = [1, 1]} : vector<512x384xf32> to vector<512x128xf32>
    %14 = vector.shape_cast %13 : vector<512x128xf32> to vector<2x256x128xf32>
    %15 = vector.extract_strided_slice %10 {offsets = [0, 256], sizes = [512, 128], strides = [1, 1]} : vector<512x384xf32> to vector<512x128xf32>
    %16 = vector.shape_cast %15 : vector<512x128xf32> to vector<2x256x128xf32>
    %c0_9 = arith.constant 0 : index
    %c0_10 = arith.constant 0 : index
    %17 = vector.load %arg1[%c0_9, %c0_10] : memref<2x128xbf16, #tpu.memory_space<vmem>>, vector<2x128xbf16>
    %c0_11 = arith.constant 0 : index
    %c0_12 = arith.constant 0 : index
    %18 = vector.load %arg3[%c0_11, %c0_12] : memref<128x256xbf16, #tpu.memory_space<vmem>>, vector<128x256xbf16>
    %cst_13 = arith.constant dense<0.000000e+00> : vector<2x256xf32>
    %19 = tpu.matmul %17, %18, %cst_13 {dimension_numbers = #tpu.dot_dimension_numbers<[1], [0], [0], [1], [0, 0, 1, 1], [], []>} : vector<2x128xbf16>, vector<128x256xbf16>, vector<2x256xf32> -> vector<2x256xf32>
    %20 = vector.broadcast %1 : vector<1x256xf32> to vector<2x256xf32>
    %21 = arith.addf %19, %20 : vector<2x256xf32>
    %cst_14 = arith.constant 0.000000e+00 : f32
    %22 = vector.broadcast %cst_14 : f32 to vector<2x256xf32>
    %23 = arith.maximumf %21, %22 : vector<2x256xf32>
    %24 = arith.truncf %23 : vector<2x256xf32> to vector<2x256xbf16>
    %c0_15 = arith.constant 0 : index
    %c0_16 = arith.constant 0 : index
    %25 = vector.load %arg4[%c0_15, %c0_16] : memref<256x256xbf16, #tpu.memory_space<vmem>>, vector<256x256xbf16>
    %cst_17 = arith.constant dense<0.000000e+00> : vector<2x256xf32>
    %26 = tpu.matmul %24, %25, %cst_17 {dimension_numbers = #tpu.dot_dimension_numbers<[1], [0], [0], [1], [0, 0, 1, 1], [], []>} : vector<2x256xbf16>, vector<256x256xbf16>, vector<2x256xf32> -> vector<2x256xf32>
    %27 = vector.broadcast %2 : vector<1x256xf32> to vector<2x256xf32>
    %28 = arith.addf %26, %27 : vector<2x256xf32>
    %cst_18 = arith.constant 0.000000e+00 : f32
    %29 = vector.broadcast %cst_18 : f32 to vector<2x256xf32>
    %30 = arith.maximumf %28, %29 : vector<2x256xf32>
    %31 = arith.truncf %30 : vector<2x256xf32> to vector<2x256xbf16>
    %c0_19 = arith.constant 0 : index
    %c0_20 = arith.constant 0 : index
    %32 = vector.load %arg5[%c0_19, %c0_20] : memref<256x512xbf16, #tpu.memory_space<vmem>>, vector<256x512xbf16>
    %cst_21 = arith.constant dense<0.000000e+00> : vector<2x512xf32>
    %33 = tpu.matmul %31, %32, %cst_21 {dimension_numbers = #tpu.dot_dimension_numbers<[1], [0], [0], [1], [0, 0, 1, 1], [], []>} : vector<2x256xbf16>, vector<256x512xbf16>, vector<2x512xf32> -> vector<2x512xf32>
    %34 = vector.broadcast %3 : vector<1x512xf32> to vector<2x512xf32>
    %35 = arith.addf %33, %34 : vector<2x512xf32>
    %36 = vector.extract_strided_slice %35 {offsets = [0, 0], sizes = [2, 128], strides = [1, 1]} : vector<2x512xf32> to vector<2x128xf32>
    %37 = vector.shape_cast %36 : vector<2x128xf32> to vector<2x1x128xf32>
    %38 = vector.extract_strided_slice %35 {offsets = [0, 128], sizes = [2, 128], strides = [1, 1]} : vector<2x512xf32> to vector<2x128xf32>
    %39 = vector.shape_cast %38 : vector<2x128xf32> to vector<2x1x128xf32>
    %cst_22 = arith.constant dense<0.000000e+00> : vector<2x128xf32>
    %40 = vector.multi_reduction <add>, %12, %cst_22 [1] : vector<2x256x128xf32> to vector<2x128xf32>
    %41 = vector.shape_cast %40 : vector<2x128xf32> to vector<2x1x128xf32>
    %cst_23 = arith.constant 3.906250e-03 : f32
    %42 = vector.broadcast %cst_23 : f32 to vector<2x1x128xf32>
    %43 = arith.mulf %41, %42 : vector<2x1x128xf32>
    %44 = arith.mulf %12, %12 : vector<2x256x128xf32>
    %cst_24 = arith.constant dense<0.000000e+00> : vector<2x128xf32>
    %45 = vector.multi_reduction <add>, %44, %cst_24 [1] : vector<2x256x128xf32> to vector<2x128xf32>
    %46 = vector.shape_cast %45 : vector<2x128xf32> to vector<2x1x128xf32>
    %cst_25 = arith.constant 3.906250e-03 : f32
    %47 = vector.broadcast %cst_25 : f32 to vector<2x1x128xf32>
    %48 = arith.mulf %46, %47 : vector<2x1x128xf32>
    %49 = arith.mulf %43, %43 : vector<2x1x128xf32>
    %50 = arith.subf %48, %49 : vector<2x1x128xf32>
    %cst_26 = arith.constant 0.000000e+00 : f32
    %51 = vector.broadcast %cst_26 : f32 to vector<2x1x128xf32>
    %52 = arith.maximumf %50, %51 : vector<2x1x128xf32>
    %cst_27 = arith.constant 9.99999974E-6 : f32
    %53 = vector.broadcast %cst_27 : f32 to vector<2x1x128xf32>
    %54 = arith.addf %52, %53 : vector<2x1x128xf32>
    %55 = math.rsqrt %54 : vector<2x1x128xf32>
    %56 = arith.mulf %39, %55 : vector<2x1x128xf32>
    %57 = arith.mulf %43, %56 : vector<2x1x128xf32>
    %58 = arith.subf %37, %57 : vector<2x1x128xf32>
    %59 = vector.broadcast %56 : vector<2x1x128xf32> to vector<2x256x128xf32>
    %60 = arith.mulf %12, %59 : vector<2x256x128xf32>
    %61 = vector.broadcast %58 : vector<2x1x128xf32> to vector<2x256x128xf32>
    %62 = arith.addf %60, %61 : vector<2x256x128xf32>
    %cst_28 = arith.constant 0.000000e+00 : f32
    %63 = vector.broadcast %cst_28 : f32 to vector<2x256x128xf32>
    %64 = arith.maximumf %62, %63 : vector<2x256x128xf32>
    %65 = arith.addf %64, %16 : vector<2x256x128xf32>
    %66 = vector.extract_strided_slice %35 {offsets = [0, 256], sizes = [2, 128], strides = [1, 1]} : vector<2x512xf32> to vector<2x128xf32>
    %67 = vector.shape_cast %66 : vector<2x128xf32> to vector<2x1x128xf32>
    %68 = vector.extract_strided_slice %35 {offsets = [0, 384], sizes = [2, 128], strides = [1, 1]} : vector<2x512xf32> to vector<2x128xf32>
    %69 = vector.shape_cast %68 : vector<2x128xf32> to vector<2x1x128xf32>
    %cst_29 = arith.constant dense<0.000000e+00> : vector<2x128xf32>
    %70 = vector.multi_reduction <add>, %65, %cst_29 [1] : vector<2x256x128xf32> to vector<2x128xf32>
    %71 = vector.shape_cast %70 : vector<2x128xf32> to vector<2x1x128xf32>
    %cst_30 = arith.constant 3.906250e-03 : f32
    %72 = vector.broadcast %cst_30 : f32 to vector<2x1x128xf32>
    %73 = arith.mulf %71, %72 : vector<2x1x128xf32>
    %74 = arith.mulf %65, %65 : vector<2x256x128xf32>
    %cst_31 = arith.constant dense<0.000000e+00> : vector<2x128xf32>
    %75 = vector.multi_reduction <add>, %74, %cst_31 [1] : vector<2x256x128xf32> to vector<2x128xf32>
    %76 = vector.shape_cast %75 : vector<2x128xf32> to vector<2x1x128xf32>
    %cst_32 = arith.constant 3.906250e-03 : f32
    %77 = vector.broadcast %cst_32 : f32 to vector<2x1x128xf32>
    %78 = arith.mulf %76, %77 : vector<2x1x128xf32>
    %79 = arith.mulf %73, %73 : vector<2x1x128xf32>
    %80 = arith.subf %78, %79 : vector<2x1x128xf32>
    %cst_33 = arith.constant 0.000000e+00 : f32
    %81 = vector.broadcast %cst_33 : f32 to vector<2x1x128xf32>
    %82 = arith.maximumf %80, %81 : vector<2x1x128xf32>
    %cst_34 = arith.constant 9.99999974E-6 : f32
    %83 = vector.broadcast %cst_34 : f32 to vector<2x1x128xf32>
    %84 = arith.addf %82, %83 : vector<2x1x128xf32>
    %85 = math.rsqrt %84 : vector<2x1x128xf32>
    %86 = arith.mulf %69, %85 : vector<2x1x128xf32>
    %87 = arith.mulf %73, %86 : vector<2x1x128xf32>
    %88 = arith.subf %67, %87 : vector<2x1x128xf32>
    %89 = vector.broadcast %86 : vector<2x1x128xf32> to vector<2x256x128xf32>
    %90 = arith.mulf %65, %89 : vector<2x256x128xf32>
    %91 = vector.broadcast %88 : vector<2x1x128xf32> to vector<2x256x128xf32>
    %92 = arith.addf %90, %91 : vector<2x256x128xf32>
    %cst_35 = arith.constant 0.000000e+00 : f32
    %93 = vector.broadcast %cst_35 : f32 to vector<2x256x128xf32>
    %94 = arith.maximumf %92, %93 : vector<2x256x128xf32>
    %95 = arith.addf %94, %14 : vector<2x256x128xf32>
    %96 = vector.shape_cast %95 : vector<2x256x128xf32> to vector<512x128xf32>
    %c0_36 = arith.constant 0 : index
    %c0_37 = arith.constant 0 : index
    %97 = vector.load %arg6[%c0_36, %c0_37] : memref<8x128xf32, #tpu.memory_space<vmem>>, vector<8x128xf32>
    %98 = tpu.transpose %96, [1, 0] : vector<512x128xf32> -> vector<128x512xf32>
    %cst_38 = arith.constant dense<0.000000e+00> : vector<8x512xf32>
    %99 = tpu.matmul %97, %98, %cst_38 {dimension_numbers = #tpu.dot_dimension_numbers<[1], [0], [0], [1], [0, 0, 1, 1], [], []>} : vector<8x128xf32>, vector<128x512xf32>, vector<8x512xf32> -> vector<8x512xf32>
    %c0_39 = arith.constant 0 : index
    %c0_40 = arith.constant 0 : index
    %100 = vector.load %arg8[%c0_39, %c0_40] : memref<8x1xf32, #tpu.memory_space<vmem>>, vector<8x1xf32>
    %101 = vector.broadcast %100 : vector<8x1xf32> to vector<8x512xf32>
    %102 = arith.addf %99, %101 : vector<8x512xf32>
    %c0_41 = arith.constant 0 : index
    %c0_42 = arith.constant 0 : index
    %103 = vector.load %arg9[%c0_41, %c0_42] : memref<8x512xf32, #tpu.memory_space<vmem>>, vector<8x512xf32>
    tpu.vector_store %arg9[%c0_41, %c0_42], %102 {strides = array<i32>} : memref<8x512xf32, #tpu.memory_space<vmem>>, vector<8x512xf32>,
    return
  }
}

</mosaic_0001>

<llo_original>
// kernel: base_generator_forward.1
$region0: #{base_generator_forward.1}
  #allocation0 [shape = 'u32[]', space=smem, size = 0x4, offset = 0x4, fixed_abs, tag = 'smem constant byte address 0x4 - core index']
  #allocation1 [shape = 'u32[72,128]{1,0:T(1,128)}', space=vmem, size = 0x9000, scoped, tag = 'internal scratch']
  %s0 = inlined_call_operand.vmem [shape: bf16[512,4], index: 0, kind: input, shape index: {}]
  %s1 = inlined_call_operand.vmem [shape: bf16[2,128], index: 1, kind: input, shape index: {}]
  %s2 = inlined_call_operand.vmem [shape: bf16[4,384], index: 2, kind: input, shape index: {}]
  %s3 = inlined_call_operand.vmem [shape: bf16[128,256], index: 3, kind: input, shape index: {}]
  %s4 = inlined_call_operand.vmem [shape: bf16[256,256], index: 4, kind: input, shape index: {}]
  %s5 = inlined_call_operand.vmem [shape: bf16[256,512], index: 5, kind: input, shape index: {}]
  %s6 = inlined_call_operand.vmem [shape: f32[8,128], index: 6, kind: input, shape index: {}]
  %s7 = inlined_call_operand.vmem [shape: f32[1,1408], index: 7, kind: input, shape index: {}]
  %s8 = inlined_call_operand.vmem [shape: f32[8,1], index: 8, kind: input, shape index: {}]
  %s9 = inlined_call_operand.vmem [shape: f32[8,512], index: 9, kind: output, shape index: {}]
  %s10 = sld [smem:[#allocation0]]
  $region46: #{base_generator_forward.1} parent=0
    _
  %s12 = ssub.s32 1, %s10
  %s13 = scalar_select 0, %s12, %s10
  // Predicated region
  $region2: #{base_generator_forward.1} parent=0 // pred_check
    _
  $region3: #{base_generator_forward.1} parent=0 // pred_check_branch
    %15 = sbr.rel (0) target = $region5
  $region4: #{base_generator_forward.1} parent=0 // pred_region
    _
  $region5: #{base_generator_forward.1} parent=0 // pred_fallthru
    _
  // Predicated region
  $region6: #{base_generator_forward.1} parent=0 // pred_check
    _
  $region7: #{base_generator_forward.1} parent=0 // pred_check_branch
    %17 = sbr.rel (0) target = $region9
  $region8: #{base_generator_forward.1} parent=0 // pred_region
    _
  $region9: #{base_generator_forward.1} parent=0 // pred_fallthru
    _
  // Predicated region
  $region10: #{base_generator_forward.1} parent=0 // pred_check
    _
  $region11: #{base_generator_forward.1} parent=0 // pred_check_branch
    %19 = sbr.rel (0) target = $region13
  $region12: #{base_generator_forward.1} parent=0 // pred_region
    _
  $region13: #{base_generator_forward.1} parent=0 // pred_fallthru
    _
  // Predicated region
  $region14: #{base_generator_forward.1} parent=0 // pred_check
    _
  $region15: #{base_generator_forward.1} parent=0 // pred_check_branch
    %21 = sbr.rel (0) target = $region17
  $region16: #{base_generator_forward.1} parent=0 // pred_region
    _
  $region17: #{base_generator_forward.1} parent=0 // pred_fallthru
    _
  // Predicated region
  $region18: #{base_generator_forward.1} parent=0 // pred_check
    _
  $region19: #{base_generator_forward.1} parent=0 // pred_check_branch
    %23 = sbr.rel (0) target = $region21
  $region20: #{base_generator_forward.1} parent=0 // pred_region
    _
  $region21: #{base_generator_forward.1} parent=0 // pred_fallthru
    _
  // Predicated region
  $region22: #{base_generator_forward.1} parent=0 // pred_check
    _
  $region23: #{base_generator_forward.1} parent=0 // pred_check_branch
    %25 = sbr.rel (0) target = $region25
  $region24: #{base_generator_forward.1} parent=0 // pred_region
    _
  $region25: #{base_generator_forward.1} parent=0 // pred_fallthru
    _
  // Predicated region
  $region26: #{base_generator_forward.1} parent=0 // pred_check
    _
  $region27: #{base_generator_forward.1} parent=0 // pred_check_branch
    %27 = sbr.rel (0) target = $region29
  $region28: #{base_generator_forward.1} parent=0 // pred_region
    _
  $region29: #{base_generator_forward.1} parent=0 // pred_fallthru
    _
  // Predicated region
  $region30: #{base_generator_forward.1} parent=0 // pred_check
    _
  $region31: #{base_generator_forward.1} parent=0 // pred_check_branch
    %29 = sbr.rel (0) target = $region33
  $region32: #{base_generator_forward.1} parent=0 // pred_region
    _
  $region33: #{base_generator_forward.1} parent=0 // pred_fallthru
    _
  // Predicated region
  $region34: #{base_generator_forward.1} parent=0 // pred_check
    _
  $region35: #{base_generator_forward.1} parent=0 // pred_check_branch
    %31 = sbr.rel (0) target = $region37
  $region36: #{base_generator_forward.1} parent=0 // pred_region
    _
  $region37: #{base_generator_forward.1} parent=0 // pred_fallthru
    _
  %v33 = vld [vmem:[%s7] sm:$0x7]
  %v34 = vld [vmem:[%s7 + $0x3] sm:$0x3]
  %v35 = vld [vmem:[%s7 + $0x5] sm:$0x3]
  %v36 = vld [vmem:[%s7 + $0x7] sm:$0xf]
  %v37 = vld [vmem:[%s0] sm:$0xf]
  %v38 = vld [vmem:[%s0 + $0x4] sm:$0xf]
  %v39 = vld [vmem:[%s0 + $0x8] sm:$0xf]
  %v40 = vld [vmem:[%s0 + $0xc] sm:$0xf]
  %v41 = vld [vmem:[%s0 + $0x10] sm:$0xf]
  %v42 = vld [vmem:[%s0 + $0x14] sm:$0xf]
  %v43 = vld [vmem:[%s0 + $0x18] sm:$0xf]
  %v44 = vld [vmem:[%s0 + $0x1c] sm:$0xf]
  %v45 = vld [vmem:[%s0 + $0x20] sm:$0xf]
  %v46 = vld [vmem:[%s0 + $0x24] sm:$0xf]
  %v47 = vld [vmem:[%s0 + $0x28] sm:$0xf]
  %v48 = vld [vmem:[%s0 + $0x2c] sm:$0xf]
  %v49 = vld [vmem:[%s0 + $0x30] sm:$0xf]
  %v50 = vld [vmem:[%s0 + $0x34] sm:$0xf]
  %v51 = vld [vmem:[%s0 + $0x38] sm:$0xf]
  %v52 = vld [vmem:[%s0 + $0x3c] sm:$0xf]
  %v53 = vld [vmem:[%s0 + $0x40] sm:$0xf]
  %v54 = vld [vmem:[%s0 + $0x44] sm:$0xf]
  %v55 = vld [vmem:[%s0 + $0x48] sm:$0xf]
  %v56 = vld [vmem:[%s0 + $0x4c] sm:$0xf]
  %v57 = vld [vmem:[%s0 + $0x50] sm:$0xf]
  %v58 = vld [vmem:[%s0 + $0x54] sm:$0xf]
  %v59 = vld [vmem:[%s0 + $0x58] sm:$0xf]
  %v60 = vld [vmem:[%s0 + $0x5c] sm:$0xf]
  %v61 = vld [vmem:[%s0 + $0x60] sm:$0xf]
  %v62 = vld [vmem:[%s0 + $0x64] sm:$0xf]
  %v63 = vld [vmem:[%s0 + $0x68] sm:$0xf]
  %v64 = vld [vmem:[%s0 + $0x6c] sm:$0xf]
  %v65 = vld [vmem:[%s0 + $0x70] sm:$0xf]
  %v66 = vld [vmem:[%s0 + $0x74] sm:$0xf]
  %v67 = vld [vmem:[%s0 + $0x78] sm:$0xf]
  %v68 = vld [vmem:[%s0 + $0x7c] sm:$0xf]
  %v69 = vld [vmem:[%s0 + $0x80] sm:$0xf]
  %v70 = vld [vmem:[%s0 + $0x84] sm:$0xf]
  %v71 = vld [vmem:[%s0 + $0x88] sm:$0xf]
  %v72 = vld [vmem:[%s0 + $0x8c] sm:$0xf]
  %v73 = vld [vmem:[%s0 + $0x90] sm:$0xf]
  %v74 = vld [vmem:[%s0 + $0x94] sm:$0xf]
  %v75 = vld [vmem:[%s0 + $0x98] sm:$0xf]
  %v76 = vld [vmem:[%s0 + $0x9c] sm:$0xf]
  %v77 = vld [vmem:[%s0 + $0xa0] sm:$0xf]
  %v78 = vld [vmem:[%s0 + $0xa4] sm:$0xf]
  %v79 = vld [vmem:[%s0 + $0xa8] sm:$0xf]
  %v80 = vld [vmem:[%s0 + $0xac] sm:$0xf]
  %v81 = vld [vmem:[%s0 + $0xb0] sm:$0xf]
  %v82 = vld [vmem:[%s0 + $0xb4] sm:$0xf]
  %v83 = vld [vmem:[%s0 + $0xb8] sm:$0xf]
  %v84 = vld [vmem:[%s0 + $0xbc] sm:$0xf]
  %v85 = vld [vmem:[%s0 + $0xc0] sm:$0xf]
  %v86 = vld [vmem:[%s0 + $0xc4] sm:$0xf]
  %v87 = vld [vmem:[%s0 + $0xc8] sm:$0xf]
  %v88 = vld [vmem:[%s0 + $0xcc] sm:$0xf]
  %v89 = vld [vmem:[%s0 + $0xd0] sm:$0xf]
  %v90 = vld [vmem:[%s0 + $0xd4] sm:$0xf]
  %v91 = vld [vmem:[%s0 + $0xd8] sm:$0xf]
  %v92 = vld [vmem:[%s0 + $0xdc] sm:$0xf]
  %v93 = vld [vmem:[%s0 + $0xe0] sm:$0xf]
  %v94 = vld [vmem:[%s0 + $0xe4] sm:$0xf]
  %v95 = vld [vmem:[%s0 + $0xe8] sm:$0xf]
  %v96 = vld [vmem:[%s0 + $0xec] sm:$0xf]
  %v97 = vld [vmem:[%s0 + $0xf0] sm:$0xf]
  %v98 = vld [vmem:[%s0 + $0xf4] sm:$0xf]
  %v99 = vld [vmem:[%s0 + $0xf8] sm:$0xf]
  %v100 = vld [vmem:[%s0 + $0xfc] sm:$0xf]
  %v101 = vld [vmem:[%s2] sm:$0x3f]
  %v103 = vperm.slane %v33, 0
  %v104 = vperm.slane %v33, 1
  %v105 = vperm.slane %v33, 2
  %v173 = vunpack.c.l.b16 %v37
  %v174 = vunpack.c.l.b16 %v38
  %v175 = vunpack.c.l.b16 %v39
  %v176 = vunpack.c.l.b16 %v40
  %v177 = vunpack.c.l.b16 %v41
  %v178 = vunpack.c.l.b16 %v42
  %v179 = vunpack.c.l.b16 %v43
  %v180 = vunpack.c.l.b16 %v44
  %v181 = vunpack.c.l.b16 %v45
  %v182 = vunpack.c.l.b16 %v46
  %v183 = vunpack.c.l.b16 %v47
  %v184 = vunpack.c.l.b16 %v48
  %v185 = vunpack.c.l.b16 %v49
  %v186 = vunpack.c.l.b16 %v50
  %v187 = vunpack.c.l.b16 %v51
  %v188 = vunpack.c.l.b16 %v52
  %v189 = vunpack.c.l.b16 %v53
  %v190 = vunpack.c.l.b16 %v54
  %v191 = vunpack.c.l.b16 %v55
  %v192 = vunpack.c.l.b16 %v56
  %v193 = vunpack.c.l.b16 %v57
  %v194 = vunpack.c.l.b16 %v58
  %v195 = vunpack.c.l.b16 %v59
  %v196 = vunpack.c.l.b16 %v60
  %v197 = vunpack.c.l.b16 %v61
  %v198 = vunpack.c.l.b16 %v62
  %v199 = vunpack.c.l.b16 %v63
  %v200 = vunpack.c.l.b16 %v64
  %v201 = vunpack.c.l.b16 %v65
  %v202 = vunpack.c.l.b16 %v66
  %v203 = vunpack.c.l.b16 %v67
  %v204 = vunpack.c.l.b16 %v68
  %v205 = vunpack.c.l.b16 %v69
  %v206 = vunpack.c.l.b16 %v70
  %v207 = vunpack.c.l.b16 %v71
  %v208 = vunpack.c.l.b16 %v72
  %v209 = vunpack.c.l.b16 %v73
  %v210 = vunpack.c.l.b16 %v74
  %v211 = vunpack.c.l.b16 %v75
  %v212 = vunpack.c.l.b16 %v76
  %v213 = vunpack.c.l.b16 %v77
  %v214 = vunpack.c.l.b16 %v78
  %v215 = vunpack.c.l.b16 %v79
  %v216 = vunpack.c.l.b16 %v80
  %v217 = vunpack.c.l.b16 %v81
  %v218 = vunpack.c.l.b16 %v82
  %v219 = vunpack.c.l.b16 %v83
  %v220 = vunpack.c.l.b16 %v84
  %v221 = vunpack.c.l.b16 %v85
  %v222 = vunpack.c.l.b16 %v86
  %v223 = vunpack.c.l.b16 %v87
  %v224 = vunpack.c.l.b16 %v88
  %v225 = vunpack.c.l.b16 %v89
  %v226 = vunpack.c.l.b16 %v90
  %v227 = vunpack.c.l.b16 %v91
  %v228 = vunpack.c.l.b16 %v92
  %v229 = vunpack.c.l.b16 %v93
  %v230 = vunpack.c.l.b16 %v94
  %v231 = vunpack.c.l.b16 %v95
  %v232 = vunpack.c.l.b16 %v96
  %v233 = vunpack.c.l.b16 %v97
  %v234 = vunpack.c.l.b16 %v98
  %v235 = vunpack.c.l.b16 %v99
  %v236 = vunpack.c.l.b16 %v100
  %v237 = vpack.c.b16 %v174, %v173
  %v238 = vpack.c.b16 %v176, %v175
  %v239 = vpack.c.b16 %v178, %v177
  %v240 = vpack.c.b16 %v180, %v179
  %v241 = vpack.c.b16 %v182, %v181
  %v242 = vpack.c.b16 %v184, %v183
  %v243 = vpack.c.b16 %v186, %v185
  %v244 = vpack.c.b16 %v188, %v187
  %v245 = vpack.c.b16 %v190, %v189
  %v246 = vpack.c.b16 %v192, %v191
  %v247 = vpack.c.b16 %v194, %v193
  %v248 = vpack.c.b16 %v196, %v195
  %v249 = vpack.c.b16 %v198, %v197
  %v250 = vpack.c.b16 %v200, %v199
  %v251 = vpack.c.b16 %v202, %v201
  %v252 = vpack.c.b16 %v204, %v203
  %v253 = vpack.c.b16 %v206, %v205
  %v254 = vpack.c.b16 %v208, %v207
  %v255 = vpack.c.b16 %v210, %v209
  %v256 = vpack.c.b16 %v212, %v211
  %v257 = vpack.c.b16 %v214, %v213
  %v258 = vpack.c.b16 %v216, %v215
  %v259 = vpack.c.b16 %v218, %v217
  %v260 = vpack.c.b16 %v220, %v219
  %v261 = vpack.c.b16 %v222, %v221
  %v262 = vpack.c.b16 %v224, %v223
  %v263 = vpack.c.b16 %v226, %v225
  %v264 = vpack.c.b16 %v228, %v227
  %v265 = vpack.c.b16 %v230, %v229
  %v266 = vpack.c.b16 %v232, %v231
  %v267 = vpack.c.b16 %v234, %v233
  %v268 = vpack.c.b16 %v236, %v235
  %270 = vst [vmem:[#allocation1] ss:$4 sm:$0xff] %v101
  %v271 = vld.sshfl [vmem:[#allocation1] sm:$0xff pattern:$0x73625140]
  %v272 = vld.sshfl [vmem:[#allocation1 + $0x8] sm:$0xff pattern:$0x73625140]
  %v273 = vld.sshfl [vmem:[#allocation1 + $0x10] sm:$0xff pattern:$0x73625140]
  %vm274 = vcmask 31744
  %v276 = vsel %vm274, %v237, 0
  %v279 = vsel %vm274, %v238, 0
  %v282 = vsel %vm274, %v239, 0
  %v285 = vsel %vm274, %v240, 0
  %v288 = vsel %vm274, %v241, 0
  %v291 = vsel %vm274, %v242, 0
  %v294 = vsel %vm274, %v243, 0
  %v297 = vsel %vm274, %v244, 0
  %v300 = vsel %vm274, %v245, 0
  %v303 = vsel %vm274, %v246, 0
  %v306 = vsel %vm274, %v247, 0
  %v309 = vsel %vm274, %v248, 0
  %v312 = vsel %vm274, %v249, 0
  %v315 = vsel %vm274, %v250, 0
  %v318 = vsel %vm274, %v251, 0
  %v321 = vsel %vm274, %v252, 0
  %v324 = vsel %vm274, %v253, 0
  %v327 = vsel %vm274, %v254, 0
  %v330 = vsel %vm274, %v255, 0
  %v333 = vsel %vm274, %v256, 0
  %v336 = vsel %vm274, %v257, 0
  %v339 = vsel %vm274, %v258, 0
  %v342 = vsel %vm274, %v259, 0
  %v345 = vsel %vm274, %v260, 0
  %v348 = vsel %vm274, %v261, 0
  %v351 = vsel %vm274, %v262, 0
  %v354 = vsel %vm274, %v263, 0
  %v357 = vsel %vm274, %v264, 0
  %v360 = vsel %vm274, %v265, 0
  %v363 = vsel %vm274, %v266, 0
  %v366 = vsel %vm274, %v267, 0
  %v369 = vsel %vm274, %v268, 0
  %vm371 = vcmask 1041408
  %v372 = vsel %vm371, %v271, 0
  %v374 = vsel %vm371, %v272, 0
  %v376 = vsel %vm371, %v273, 0
  %378 = vmatpush.bf16.msra.mxu0 0
  %379 = vmatpush.bf16.msra.mxu0 0
  %380 = vmatpush.bf16.msra.mxu0 0
  %381 = vmatpush.bf16.msra.mxu0 0
  %382 = vmatpush.bf16.msra.mxu0 0
  %383 = vmatpush.bf16.msra.mxu0 0
  %384 = vmatpush.bf16.msra.mxu0 0
  %385 = vmatpush.bf16.msra.mxu0 %v372
  %386 = vmatmul.bf16.gmra.mxu0 %v276
  %v387 = vpop.f32.mrf.mxu0
  %v388 = vadd.f32 %v103, %v387
  %v389 = vpop.f32.mrf.mxu0
  %v390 = vadd.f32 %v103, %v389
  %391 = vmatmul.bf16.gmra.mxu0 %v279
  %v392 = vpop.f32.mrf.mxu0
  %v393 = vadd.f32 %v103, %v392
  %v394 = vpop.f32.mrf.mxu0
  %v395 = vadd.f32 %v103, %v394
  %396 = vmatmul.bf16.gmra.mxu0 %v282
  %v397 = vpop.f32.mrf.mxu0
  %v398 = vadd.f32 %v103, %v397
  %v399 = vpop.f32.mrf.mxu0
  %v400 = vadd.f32 %v103, %v399
  %401 = vmatmul.bf16.gmra.mxu0 %v285
  %v402 = vpop.f32.mrf.mxu0
  %v403 = vadd.f32 %v103, %v402
  %v404 = vpop.f32.mrf.mxu0
  %v405 = vadd.f32 %v103, %v404
  %406 = vmatmul.bf16.gmra.mxu0 %v288
  %v407 = vpop.f32.mrf.mxu0
  %v408 = vadd.f32 %v103, %v407
  %v409 = vpop.f32.mrf.mxu0
  %v410 = vadd.f32 %v103, %v409
  %411 = vmatmul.bf16.gmra.mxu0 %v291
  %v412 = vpop.f32.mrf.mxu0
  %v413 = vadd.f32 %v103, %v412
  %v414 = vpop.f32.mrf.mxu0
  %v415 = vadd.f32 %v103, %v414
  %416 = vmatmul.bf16.gmra.mxu0 %v294
  %v417 = vpop.f32.mrf.mxu0
  %v418 = vadd.f32 %v103, %v417
  %v419 = vpop.f32.mrf.mxu0
  %v420 = vadd.f32 %v103, %v419
  %421 = vmatmul.bf16.gmra.mxu0 %v297
  %v422 = vpop.f32.mrf.mxu0
  %v423 = vadd.f32 %v103, %v422
  %v424 = vpop.f32.mrf.mxu0
  %v425 = vadd.f32 %v103, %v424
  %426 = vmatmul.bf16.gmra.mxu0 %v300
  %v427 = vpop.f32.mrf.mxu0
  %v428 = vadd.f32 %v103, %v427
  %v429 = vpop.f32.mrf.mxu0
  %v430 = vadd.f32 %v103, %v429
  %431 = vmatmul.bf16.gmra.mxu0 %v303
  %v432 = vpop.f32.mrf.mxu0
  %v433 = vadd.f32 %v103, %v432
  %v434 = vpop.f32.mrf.mxu0
  %v435 = vadd.f32 %v103, %v434
  %436 = vmatmul.bf16.gmra.mxu0 %v306
  %v437 = vpop.f32.mrf.mxu0
  %v438 = vadd.f32 %v103, %v437
  %v439 = vpop.f32.mrf.mxu0
  %v440 = vadd.f32 %v103, %v439
  %441 = vmatmul.bf16.gmra.mxu0 %v309
  %v442 = vpop.f32.mrf.mxu0
  %v443 = vadd.f32 %v103, %v442
  %v444 = vpop.f32.mrf.mxu0
  %v445 = vadd.f32 %v103, %v444
  %446 = vmatmul.bf16.gmra.mxu0 %v312
  %v447 = vpop.f32.mrf.mxu0
  %v448 = vadd.f32 %v103, %v447
  %v449 = vpop.f32.mrf.mxu0
  %v450 = vadd.f32 %v103, %v449
  %451 = vmatmul.bf16.gmra.mxu0 %v315
  %v452 = vpop.f32.mrf.mxu0
  %v453 = vadd.f32 %v103, %v452
  %v454 = vpop.f32.mrf.mxu0
  %v455 = vadd.f32 %v103, %v454
  %456 = vmatmul.bf16.gmra.mxu0 %v318
  %v457 = vpop.f32.mrf.mxu0
  %v458 = vadd.f32 %v103, %v457
  %v459 = vpop.f32.mrf.mxu0
  %v460 = vadd.f32 %v103, %v459
  %461 = vmatmul.bf16.gmra.mxu0 %v321
  %v462 = vpop.f32.mrf.mxu0
  %v463 = vadd.f32 %v103, %v462
  %v464 = vpop.f32.mrf.mxu0
  %v465 = vadd.f32 %v103, %v464
  %466 = vmatmul.bf16.gmra.mxu0 %v324
  %v467 = vpop.f32.mrf.mxu0
  %v468 = vadd.f32 %v103, %v467
  %v469 = vpop.f32.mrf.mxu0
  %v470 = vadd.f32 %v103, %v469
  %471 = vmatmul.bf16.gmra.mxu0 %v327
  %v472 = vpop.f32.mrf.mxu0
  %v473 = vadd.f32 %v103, %v472
  %v474 = vpop.f32.mrf.mxu0
  %v475 = vadd.f32 %v103, %v474
  %476 = vmatmul.bf16.gmra.mxu0 %v330
  %v477 = vpop.f32.mrf.mxu0
  %v478 = vadd.f32 %v103, %v477
  %v479 = vpop.f32.mrf.mxu0
  %v480 = vadd.f32 %v103, %v479
  %481 = vmatmul.bf16.gmra.mxu0 %v333
  %v482 = vpop.f32.mrf.mxu0
  %v483 = vadd.f32 %v103, %v482
  %v484 = vpop.f32.mrf.mxu0
  %v485 = vadd.f32 %v103, %v484
  %486 = vmatmul.bf16.gmra.mxu0 %v336
  %v487 = vpop.f32.mrf.mxu0
  %v488 = vadd.f32 %v103, %v487
  %v489 = vpop.f32.mrf.mxu0
  %v490 = vadd.f32 %v103, %v489
  %491 = vmatmul.bf16.gmra.mxu0 %v339
  %v492 = vpop.f32.mrf.mxu0
  %v493 = vadd.f32 %v103, %v492
  %v494 = vpop.f32.mrf.mxu0
  %v495 = vadd.f32 %v103, %v494
  %496 = vmatmul.bf16.gmra.mxu0 %v342
  %v497 = vpop.f32.mrf.mxu0
  %v498 = vadd.f32 %v103, %v497
  %v499 = vpop.f32.mrf.mxu0
  %v500 = vadd.f32 %v103, %v499
  %501 = vmatmul.bf16.gmra.mxu0 %v345
  %v502 = vpop.f32.mrf.mxu0
  %v503 = vadd.f32 %v103, %v502
  %v504 = vpop.f32.mrf.mxu0
  %v505 = vadd.f32 %v103, %v504
  %506 = vmatmul.bf16.gmra.mxu0 %v348
  %v507 = vpop.f32.mrf.mxu0
  %v508 = vadd.f32 %v103, %v507
  %v509 = vpop.f32.mrf.mxu0
  %v510 = vadd.f32 %v103, %v509
  %511 = vmatmul.bf16.gmra.mxu0 %v351
  %v512 = vpop.f32.mrf.mxu0
  %v513 = vadd.f32 %v103, %v512
  %v514 = vpop.f32.mrf.mxu0
  %v515 = vadd.f32 %v103, %v514
  %516 = vmatmul.bf16.gmra.mxu0 %v354
  %v517 = vpop.f32.mrf.mxu0
  %v518 = vadd.f32 %v103, %v517
  %v519 = vpop.f32.mrf.mxu0
  %v520 = vadd.f32 %v103, %v519
  %521 = vmatmul.bf16.gmra.mxu0 %v357
  %v522 = vpop.f32.mrf.mxu0
  %v523 = vadd.f32 %v103, %v522
  %v524 = vpop.f32.mrf.mxu0
  %v525 = vadd.f32 %v103, %v524
  %526 = vmatmul.bf16.gmra.mxu0 %v360
  %v527 = vpop.f32.mrf.mxu0
  %v528 = vadd.f32 %v103, %v527
  %v529 = vpop.f32.mrf.mxu0
  %v530 = vadd.f32 %v103, %v529
  %531 = vmatmul.bf16.gmra.mxu0 %v363
  %v532 = vpop.f32.mrf.mxu0
  %v533 = vadd.f32 %v103, %v532
  %v534 = vpop.f32.mrf.mxu0
  %v535 = vadd.f32 %v103, %v534
  %536 = vmatmul.bf16.gmra.mxu0 %v366
  %v537 = vpop.f32.mrf.mxu0
  %v538 = vadd.f32 %v103, %v537
  %v539 = vpop.f32.mrf.mxu0
  %v540 = vadd.f32 %v103, %v539
  %541 = vmatmul.bf16.gmra.mxu0 %v369
  %v542 = vpop.f32.mrf.mxu0
  %v543 = vadd.f32 %v103, %v542
  %v544 = vpop.f32.mrf.mxu0
  %v545 = vadd.f32 %v103, %v544
  %546 = vdwg.mxu0
  %547 = vmatpush.bf16.msra.mxu0 0
  %548 = vmatpush.bf16.msra.mxu0 0
  %549 = vmatpush.bf16.msra.mxu0 0
  %550 = vmatpush.bf16.msra.mxu0 0
  %551 = vmatpush.bf16.msra.mxu0 0
  %552 = vmatpush.bf16.msra.mxu0 0
  %553 = vmatpush.bf16.msra.mxu0 0
  %554 = vmatpush.bf16.msra.mxu0 %v374
  %555 = vmatmul.bf16.gmra.mxu0 %v276
  %v556 = vpop.f32.mrf.mxu0
  %v557 = vadd.f32 %v104, %v556
  %v558 = vpop.f32.mrf.mxu0
  %v559 = vadd.f32 %v104, %v558
  %560 = vmatmul.bf16.gmra.mxu0 %v279
  %v561 = vpop.f32.mrf.mxu0
  %v562 = vadd.f32 %v104, %v561
  %v563 = vpop.f32.mrf.mxu0
  %v564 = vadd.f32 %v104, %v563
  %565 = vmatmul.bf16.gmra.mxu0 %v282
  %v566 = vpop.f32.mrf.mxu0
  %v567 = vadd.f32 %v104, %v566
  %v568 = vpop.f32.mrf.mxu0
  %v569 = vadd.f32 %v104, %v568
  %570 = vmatmul.bf16.gmra.mxu0 %v285
  %v571 = vpop.f32.mrf.mxu0
  %v572 = vadd.f32 %v104, %v571
  %v573 = vpop.f32.mrf.mxu0
  %v574 = vadd.f32 %v104, %v573
  %575 = vmatmul.bf16.gmra.mxu0 %v288
  %v576 = vpop.f32.mrf.mxu0
  %v577 = vadd.f32 %v104, %v576
  %v578 = vpop.f32.mrf.mxu0
  %v579 = vadd.f32 %v104, %v578
  %580 = vmatmul.bf16.gmra.mxu0 %v291
  %v581 = vpop.f32.mrf.mxu0
  %v582 = vadd.f32 %v104, %v581
  %v583 = vpop.f32.mrf.mxu0
  %v584 = vadd.f32 %v104, %v583
  %585 = vmatmul.bf16.gmra.mxu0 %v294
  %v586 = vpop.f32.mrf.mxu0
  %v587 = vadd.f32 %v104, %v586
  %v588 = vpop.f32.mrf.mxu0
  %v589 = vadd.f32 %v104, %v588
  %590 = vmatmul.bf16.gmra.mxu0 %v297
  %v591 = vpop.f32.mrf.mxu0
  %v592 = vadd.f32 %v104, %v591
  %v593 = vpop.f32.mrf.mxu0
  %v594 = vadd.f32 %v104, %v593
  %595 = vmatmul.bf16.gmra.mxu0 %v300
  %v596 = vpop.f32.mrf.mxu0
  %v597 = vadd.f32 %v104, %v596
  %v598 = vpop.f32.mrf.mxu0
  %v599 = vadd.f32 %v104, %v598
  %600 = vmatmul.bf16.gmra.mxu0 %v303
  %v601 = vpop.f32.mrf.mxu0
  %v602 = vadd.f32 %v104, %v601
  %v603 = vpop.f32.mrf.mxu0
  %v604 = vadd.f32 %v104, %v603
  %605 = vmatmul.bf16.gmra.mxu0 %v306
  %v606 = vpop.f32.mrf.mxu0
  %v607 = vadd.f32 %v104, %v606
  %v608 = vpop.f32.mrf.mxu0
  %v609 = vadd.f32 %v104, %v608
  %610 = vmatmul.bf16.gmra.mxu0 %v309
  %v611 = vpop.f32.mrf.mxu0
  %v612 = vadd.f32 %v104, %v611
  %v613 = vpop.f32.mrf.mxu0
  %v614 = vadd.f32 %v104, %v613
  %615 = vmatmul.bf16.gmra.mxu0 %v312
  %v616 = vpop.f32.mrf.mxu0
  %v617 = vadd.f32 %v104, %v616
  %v618 = vpop.f32.mrf.mxu0
  %v619 = vadd.f32 %v104, %v618
  %620 = vmatmul.bf16.gmra.mxu0 %v315
  %v621 = vpop.f32.mrf.mxu0
  %v622 = vadd.f32 %v104, %v621
  %v623 = vpop.f32.mrf.mxu0
  %v624 = vadd.f32 %v104, %v623
  %625 = vmatmul.bf16.gmra.mxu0 %v318
  %v626 = vpop.f32.mrf.mxu0
  %v627 = vadd.f32 %v104, %v626
  %v628 = vpop.f32.mrf.mxu0
  %v629 = vadd.f32 %v104, %v628
  %630 = vmatmul.bf16.gmra.mxu0 %v321
  %v631 = vpop.f32.mrf.mxu0
  %v632 = vadd.f32 %v104, %v631
  %v633 = vpop.f32.mrf.mxu0
  %v634 = vadd.f32 %v104, %v633
  %635 = vmatmul.bf16.gmra.mxu0 %v324
  %v636 = vpop.f32.mrf.mxu0
  %v637 = vadd.f32 %v104, %v636
  %v638 = vpop.f32.mrf.mxu0
  %v639 = vadd.f32 %v104, %v638
  %640 = vmatmul.bf16.gmra.mxu0 %v327
  %v641 = vpop.f32.mrf.mxu0
  %v642 = vadd.f32 %v104, %v641
  %v643 = vpop.f32.mrf.mxu0
  %v644 = vadd.f32 %v104, %v643
  %645 = vmatmul.bf16.gmra.mxu0 %v330
  %v646 = vpop.f32.mrf.mxu0
  %v647 = vadd.f32 %v104, %v646
  %v648 = vpop.f32.mrf.mxu0
  %v649 = vadd.f32 %v104, %v648
  %650 = vmatmul.bf16.gmra.mxu0 %v333
  %v651 = vpop.f32.mrf.mxu0
  %v652 = vadd.f32 %v104, %v651
  %v653 = vpop.f32.mrf.mxu0
  %v654 = vadd.f32 %v104, %v653
  %655 = vmatmul.bf16.gmra.mxu0 %v336
  %v656 = vpop.f32.mrf.mxu0
  %v657 = vadd.f32 %v104, %v656
  %v658 = vpop.f32.mrf.mxu0
  %v659 = vadd.f32 %v104, %v658
  %660 = vmatmul.bf16.gmra.mxu0 %v339
  %v661 = vpop.f32.mrf.mxu0
  %v662 = vadd.f32 %v104, %v661
  %v663 = vpop.f32.mrf.mxu0
  %v664 = vadd.f32 %v104, %v663
  %665 = vmatmul.bf16.gmra.mxu0 %v342
  %v666 = vpop.f32.mrf.mxu0
  %v667 = vadd.f32 %v104, %v666
  %v668 = vpop.f32.mrf.mxu0
  %v669 = vadd.f32 %v104, %v668
  %670 = vmatmul.bf16.gmra.mxu0 %v345
  %v671 = vpop.f32.mrf.mxu0
  %v672 = vadd.f32 %v104, %v671
  %v673 = vpop.f32.mrf.mxu0
  %v674 = vadd.f32 %v104, %v673
  %675 = vmatmul.bf16.gmra.mxu0 %v348
  %v676 = vpop.f32.mrf.mxu0
  %v677 = vadd.f32 %v104, %v676
  %v678 = vpop.f32.mrf.mxu0
  %v679 = vadd.f32 %v104, %v678
  %680 = vmatmul.bf16.gmra.mxu0 %v351
  %v681 = vpop.f32.mrf.mxu0
  %v682 = vadd.f32 %v104, %v681
  %v683 = vpop.f32.mrf.mxu0
  %v684 = vadd.f32 %v104, %v683
  %685 = vmatmul.bf16.gmra.mxu0 %v354
  %v686 = vpop.f32.mrf.mxu0
  %v687 = vadd.f32 %v104, %v686
  %v688 = vpop.f32.mrf.mxu0
  %v689 = vadd.f32 %v104, %v688
  %690 = vmatmul.bf16.gmra.mxu0 %v357
  %v691 = vpop.f32.mrf.mxu0
  %v692 = vadd.f32 %v104, %v691
  %v693 = vpop.f32.mrf.mxu0
  %v694 = vadd.f32 %v104, %v693
  %695 = vmatmul.bf16.gmra.mxu0 %v360
  %v696 = vpop.f32.mrf.mxu0
  %v697 = vadd.f32 %v104, %v696
  %v698 = vpop.f32.mrf.mxu0
  %v699 = vadd.f32 %v104, %v698
  %700 = vmatmul.bf16.gmra.mxu0 %v363
  %v701 = vpop.f32.mrf.mxu0
  %v702 = vadd.f32 %v104, %v701
  %v703 = vpop.f32.mrf.mxu0
  %v704 = vadd.f32 %v104, %v703
  %705 = vmatmul.bf16.gmra.mxu0 %v366
  %v706 = vpop.f32.mrf.mxu0
  %v707 = vadd.f32 %v104, %v706
  %v708 = vpop.f32.mrf.mxu0
  %v709 = vadd.f32 %v104, %v708
  %710 = vmatmul.bf16.gmra.mxu0 %v369
  %v711 = vpop.f32.mrf.mxu0
  %v712 = vadd.f32 %v104, %v711
  %v713 = vpop.f32.mrf.mxu0
  %v714 = vadd.f32 %v104, %v713
  %715 = vdwg.mxu0
  %716 = vmatpush.bf16.msra.mxu0 0
  %717 = vmatpush.bf16.msra.mxu0 0
  %718 = vmatpush.bf16.msra.mxu0 0
  %719 = vmatpush.bf16.msra.mxu0 0
  %720 = vmatpush.bf16.msra.mxu0 0
  %721 = vmatpush.bf16.msra.mxu0 0
  %722 = vmatpush.bf16.msra.mxu0 0
  %723 = vmatpush.bf16.msra.mxu0 %v376
  %724 = vmatmul.bf16.gmra.mxu0 %v276
  %v725 = vpop.f32.mrf.mxu0
  %v726 = vadd.f32 %v105, %v725
  %v727 = vpop.f32.mrf.mxu0
  %v728 = vadd.f32 %v105, %v727
  %729 = vmatmul.bf16.gmra.mxu0 %v279
  %v730 = vpop.f32.mrf.mxu0
  %v731 = vadd.f32 %v105, %v730
  %v732 = vpop.f32.mrf.mxu0
  %v733 = vadd.f32 %v105, %v732
  %734 = vmatmul.bf16.gmra.mxu0 %v282
  %v735 = vpop.f32.mrf.mxu0
  %v736 = vadd.f32 %v105, %v735
  %v737 = vpop.f32.mrf.mxu0
  %v738 = vadd.f32 %v105, %v737
  %739 = vmatmul.bf16.gmra.mxu0 %v285
  %v740 = vpop.f32.mrf.mxu0
  %v741 = vadd.f32 %v105, %v740
  %v742 = vpop.f32.mrf.mxu0
  %v743 = vadd.f32 %v105, %v742
  %744 = vmatmul.bf16.gmra.mxu0 %v288
  %v745 = vpop.f32.mrf.mxu0
  %v746 = vadd.f32 %v105, %v745
  %v747 = vpop.f32.mrf.mxu0
  %v748 = vadd.f32 %v105, %v747
  %749 = vmatmul.bf16.gmra.mxu0 %v291
  %v750 = vpop.f32.mrf.mxu0
  %v751 = vadd.f32 %v105, %v750
  %v752 = vpop.f32.mrf.mxu0
  %v753 = vadd.f32 %v105, %v752
  %754 = vmatmul.bf16.gmra.mxu0 %v294
  %v755 = vpop.f32.mrf.mxu0
  %v756 = vadd.f32 %v105, %v755
  %v757 = vpop.f32.mrf.mxu0
  %v758 = vadd.f32 %v105, %v757
  %759 = vmatmul.bf16.gmra.mxu0 %v297
  %v760 = vpop.f32.mrf.mxu0
  %v761 = vadd.f32 %v105, %v760
  %v762 = vpop.f32.mrf.mxu0
  %v763 = vadd.f32 %v105, %v762
  %764 = vmatmul.bf16.gmra.mxu0 %v300
  %v765 = vpop.f32.mrf.mxu0
  %v766 = vadd.f32 %v105, %v765
  %v767 = vpop.f32.mrf.mxu0
  %v768 = vadd.f32 %v105, %v767
  %769 = vmatmul.bf16.gmra.mxu0 %v303
  %v770 = vpop.f32.mrf.mxu0
  %v771 = vadd.f32 %v105, %v770
  %v772 = vpop.f32.mrf.mxu0
  %v773 = vadd.f32 %v105, %v772
  %774 = vmatmul.bf16.gmra.mxu0 %v306
  %v775 = vpop.f32.mrf.mxu0
  %v776 = vadd.f32 %v105, %v775
  %v777 = vpop.f32.mrf.mxu0
  %v778 = vadd.f32 %v105, %v777
  %779 = vmatmul.bf16.gmra.mxu0 %v309
  %v780 = vpop.f32.mrf.mxu0
  %v781 = vadd.f32 %v105, %v780
  %v782 = vpop.f32.mrf.mxu0
  %v783 = vadd.f32 %v105, %v782
  %784 = vmatmul.bf16.gmra.mxu0 %v312
  %v785 = vpop.f32.mrf.mxu0
  %v786 = vadd.f32 %v105, %v785
  %v787 = vpop.f32.mrf.mxu0
  %v788 = vadd.f32 %v105, %v787
  %789 = vmatmul.bf16.gmra.mxu0 %v315
  %v790 = vpop.f32.mrf.mxu0
  %v791 = vadd.f32 %v105, %v790
  %v792 = vpop.f32.mrf.mxu0
  %v793 = vadd.f32 %v105, %v792
  %794 = vmatmul.bf16.gmra.mxu0 %v318
  %v795 = vpop.f32.mrf.mxu0
  %v796 = vadd.f32 %v105, %v795
  %v797 = vpop.f32.mrf.mxu0
  %v798 = vadd.f32 %v105, %v797
  %799 = vmatmul.bf16.gmra.mxu0 %v321
  %v800 = vpop.f32.mrf.mxu0
  %v801 = vadd.f32 %v105, %v800
  %v802 = vpop.f32.mrf.mxu0
  %v803 = vadd.f32 %v105, %v802
  %804 = vmatmul.bf16.gmra.mxu0 %v324
  %v805 = vpop.f32.mrf.mxu0
  %v806 = vadd.f32 %v105, %v805
  %v807 = vpop.f32.mrf.mxu0
  %v808 = vadd.f32 %v105, %v807
  %809 = vmatmul.bf16.gmra.mxu0 %v327
  %v810 = vpop.f32.mrf.mxu0
  %v811 = vadd.f32 %v105, %v810
  %v812 = vpop.f32.mrf.mxu0
  %v813 = vadd.f32 %v105, %v812
  %814 = vmatmul.bf16.gmra.mxu0 %v330
  %v815 = vpop.f32.mrf.mxu0
  %v816 = vadd.f32 %v105, %v815
  %v817 = vpop.f32.mrf.mxu0
  %v818 = vadd.f32 %v105, %v817
  %819 = vmatmul.bf16.gmra.mxu0 %v333
  %v820 = vpop.f32.mrf.mxu0
  %v821 = vadd.f32 %v105, %v820
  %v822 = vpop.f32.mrf.mxu0
  %v823 = vadd.f32 %v105, %v822
  %824 = vmatmul.bf16.gmra.mxu0 %v336
  %v825 = vpop.f32.mrf.mxu0
  %v826 = vadd.f32 %v105, %v825
  %v827 = vpop.f32.mrf.mxu0
  %v828 = vadd.f32 %v105, %v827
  %829 = vmatmul.bf16.gmra.mxu0 %v339
  %v830 = vpop.f32.mrf.mxu0
  %v831 = vadd.f32 %v105, %v830
  %v832 = vpop.f32.mrf.mxu0
  %v833 = vadd.f32 %v105, %v832
  %834 = vmatmul.bf16.gmra.mxu0 %v342
  %v835 = vpop.f32.mrf.mxu0
  %v836 = vadd.f32 %v105, %v835
  %v837 = vpop.f32.mrf.mxu0
  %v838 = vadd.f32 %v105, %v837
  %839 = vmatmul.bf16.gmra.mxu0 %v345
  %v840 = vpop.f32.mrf.mxu0
  %v841 = vadd.f32 %v105, %v840
  %v842 = vpop.f32.mrf.mxu0
  %v843 = vadd.f32 %v105, %v842
  %844 = vmatmul.bf16.gmra.mxu0 %v348
  %v845 = vpop.f32.mrf.mxu0
  %v846 = vadd.f32 %v105, %v845
  %v847 = vpop.f32.mrf.mxu0
  %v848 = vadd.f32 %v105, %v847
  %849 = vmatmul.bf16.gmra.mxu0 %v351
  %v850 = vpop.f32.mrf.mxu0
  %v851 = vadd.f32 %v105, %v850
  %v852 = vpop.f32.mrf.mxu0
  %v853 = vadd.f32 %v105, %v852
  %854 = vmatmul.bf16.gmra.mxu0 %v354
  %v855 = vpop.f32.mrf.mxu0
  %v856 = vadd.f32 %v105, %v855
  %v857 = vpop.f32.mrf.mxu0
  %v858 = vadd.f32 %v105, %v857
  %859 = vmatmul.bf16.gmra.mxu0 %v357
  %v860 = vpop.f32.mrf.mxu0
  %v861 = vadd.f32 %v105, %v860
  %v862 = vpop.f32.mrf.mxu0
  %v863 = vadd.f32 %v105, %v862
  %864 = vmatmul.bf16.gmra.mxu0 %v360
  %v865 = vpop.f32.mrf.mxu0
  %v866 = vadd.f32 %v105, %v865
  %v867 = vpop.f32.mrf.mxu0
  %v868 = vadd.f32 %v105, %v867
  %869 = vmatmul.bf16.gmra.mxu0 %v363
  %v870 = vpop.f32.mrf.mxu0
  %v871 = vadd.f32 %v105, %v870
  %v872 = vpop.f32.mrf.mxu0
  %v873 = vadd.f32 %v105, %v872
  %874 = vmatmul.bf16.gmra.mxu0 %v366
  %v875 = vpop.f32.mrf.mxu0
  %v876 = vadd.f32 %v105, %v875
  %v877 = vpop.f32.mrf.mxu0
  %v878 = vadd.f32 %v105, %v877
  %879 = vmatmul.bf16.gmra.mxu0 %v369
  %v880 = vpop.f32.mrf.mxu0
  %v881 = vadd.f32 %v105, %v880
  %v882 = vpop.f32.mrf.mxu0
  %v883 = vadd.f32 %v105, %v882
  %884 = vdwg.mxu0
  %v885 = vmax.f32 %v388, 0.0
  %v886 = vmax.f32 %v557, 0.0
  %v887 = vmax.f32 %v726, 0.0
  %v888 = vmax.f32 %v390, 0.0
  %v889 = vmax.f32 %v559, 0.0
  %v890 = vmax.f32 %v728, 0.0
  %v891 = vmax.f32 %v393, 0.0
  %v892 = vmax.f32 %v562, 0.0
  %v893 = vmax.f32 %v731, 0.0
  %v894 = vmax.f32 %v395, 0.0
  %v895 = vmax.f32 %v564, 0.0
  %v896 = vmax.f32 %v733, 0.0
  %v897 = vmax.f32 %v398, 0.0
  %v898 = vmax.f32 %v567, 0.0
  %v899 = vmax.f32 %v736, 0.0
  %v900 = vmax.f32 %v400, 0.0
  %v901 = vmax.f32 %v569, 0.0
  %v902 = vmax.f32 %v738, 0.0
  %v903 = vmax.f32 %v403, 0.0
  %v904 = vmax.f32 %v572, 0.0
  %v905 = vmax.f32 %v741, 0.0
  %v906 = vmax.f32 %v405, 0.0
  %v907 = vmax.f32 %v574, 0.0
  %v908 = vmax.f32 %v743, 0.0
  %v909 = vmax.f32 %v408, 0.0
  %v910 = vmax.f32 %v577, 0.0
  %v911 = vmax.f32 %v746, 0.0
  %v912 = vmax.f32 %v410, 0.0
  %v913 = vmax.f32 %v579, 0.0
  %v914 = vmax.f32 %v748, 0.0
  %v915 = vmax.f32 %v413, 0.0
  %v916 = vmax.f32 %v582, 0.0
  %v917 = vmax.f32 %v751, 0.0
  %v918 = vmax.f32 %v415, 0.0
  %v919 = vmax.f32 %v584, 0.0
  %v920 = vmax.f32 %v753, 0.0
  %v921 = vmax.f32 %v418, 0.0
  %v922 = vmax.f32 %v587, 0.0
  %v923 = vmax.f32 %v756, 0.0
  %v924 = vmax.f32 %v420, 0.0
  %v925 = vmax.f32 %v589, 0.0
  %v926 = vmax.f32 %v758, 0.0
  %v927 = vmax.f32 %v423, 0.0
  %v928 = vmax.f32 %v592, 0.0
  %v929 = vmax.f32 %v761, 0.0
  %v930 = vmax.f32 %v425, 0.0
  %v931 = vmax.f32 %v594, 0.0
  %v932 = vmax.f32 %v763, 0.0
  %v933 = vmax.f32 %v428, 0.0
  %v934 = vmax.f32 %v597, 0.0
  %v935 = vmax.f32 %v766, 0.0
  %v936 = vmax.f32 %v430, 0.0
  %v937 = vmax.f32 %v599, 0.0
  %v938 = vmax.f32 %v768, 0.0
  %v939 = vmax.f32 %v433, 0.0
  %v940 = vmax.f32 %v602, 0.0
  %v941 = vmax.f32 %v771, 0.0
  %v942 = vmax.f32 %v435, 0.0
  %v943 = vmax.f32 %v604, 0.0
  %v944 = vmax.f32 %v773, 0.0
  %v945 = vmax.f32 %v438, 0.0
  %v946 = vmax.f32 %v607, 0.0
  %v947 = vmax.f32 %v776, 0.0
  %v948 = vmax.f32 %v440, 0.0
  %v949 = vmax.f32 %v609, 0.0
  %v950 = vmax.f32 %v778, 0.0
  %v951 = vmax.f32 %v443, 0.0
  %v952 = vmax.f32 %v612, 0.0
  %v953 = vmax.f32 %v781, 0.0
  %v954 = vmax.f32 %v445, 0.0
  %v955 = vmax.f32 %v614, 0.0
  %v956 = vmax.f32 %v783, 0.0
  %v957 = vmax.f32 %v448, 0.0
  %v958 = vmax.f32 %v617, 0.0
  %v959 = vmax.f32 %v786, 0.0
  %v960 = vmax.f32 %v450, 0.0
  %v961 = vmax.f32 %v619, 0.0
  %v962 = vmax.f32 %v788, 0.0
  %v963 = vmax.f32 %v453, 0.0
  %v964 = vmax.f32 %v622, 0.0
  %v965 = vmax.f32 %v791, 0.0
  %v966 = vmax.f32 %v455, 0.0
  %v967 = vmax.f32 %v624, 0.0
  %v968 = vmax.f32 %v793, 0.0
  %v969 = vmax.f32 %v458, 0.0
  %v970 = vmax.f32 %v627, 0.0
  %v971 = vmax.f32 %v796, 0.0
  %v972 = vmax.f32 %v460, 0.0
  %v973 = vmax.f32 %v629, 0.0
  %v974 = vmax.f32 %v798, 0.0
  %v975 = vmax.f32 %v463, 0.0
  %v976 = vmax.f32 %v632, 0.0
  %v977 = vmax.f32 %v801, 0.0
  %v978 = vmax.f32 %v465, 0.0
  %v979 = vmax.f32 %v634, 0.0
  %v980 = vmax.f32 %v803, 0.0
  %v981 = vmax.f32 %v468, 0.0
  %v982 = vmax.f32 %v637, 0.0
  %v983 = vmax.f32 %v806, 0.0
  %v984 = vmax.f32 %v470, 0.0
  %v985 = vmax.f32 %v639, 0.0
  %v986 = vmax.f32 %v808, 0.0
  %v987 = vmax.f32 %v473, 0.0
  %v988 = vmax.f32 %v642, 0.0
  %v989 = vmax.f32 %v811, 0.0
  %v990 = vmax.f32 %v475, 0.0
  %v991 = vmax.f32 %v644, 0.0
  %v992 = vmax.f32 %v813, 0.0
  %v993 = vmax.f32 %v478, 0.0
  %v994 = vmax.f32 %v647, 0.0
  %v995 = vmax.f32 %v816, 0.0
  %v996 = vmax.f32 %v480, 0.0
  %v997 = vmax.f32 %v649, 0.0
  %v998 = vmax.f32 %v818, 0.0
  %v999 = vmax.f32 %v483, 0.0
  %v1000 = vmax.f32 %v652, 0.0
  %v1001 = vmax.f32 %v821, 0.0
  %v1002 = vmax.f32 %v485, 0.0
  %v1003 = vmax.f32 %v654, 0.0
  %v1004 = vmax.f32 %v823, 0.0
  %v1005 = vmax.f32 %v488, 0.0
  %v1006 = vmax.f32 %v657, 0.0
  %v1007 = vmax.f32 %v826, 0.0
  %v1008 = vmax.f32 %v490, 0.0
  %v1009 = vmax.f32 %v659, 0.0
  %v1010 = vmax.f32 %v828, 0.0
  %v1011 = vmax.f32 %v493, 0.0
  %v1012 = vmax.f32 %v662, 0.0
  %v1013 = vmax.f32 %v831, 0.0
  %v1014 = vmax.f32 %v495, 0.0
  %v1015 = vmax.f32 %v664, 0.0
  %v1016 = vmax.f32 %v833, 0.0
  %v1017 = vmax.f32 %v498, 0.0
  %v1018 = vmax.f32 %v667, 0.0
  %v1019 = vmax.f32 %v836, 0.0
  %v1020 = vmax.f32 %v500, 0.0
  %v1021 = vmax.f32 %v669, 0.0
  %v1022 = vmax.f32 %v838, 0.0
  %v1023 = vmax.f32 %v503, 0.0
  %v1024 = vmax.f32 %v672, 0.0
  %v1025 = vmax.f32 %v841, 0.0
  %v1026 = vmax.f32 %v505, 0.0
  %v1027 = vmax.f32 %v674, 0.0
  %v1028 = vmax.f32 %v843, 0.0
  %v1029 = vmax.f32 %v508, 0.0
  %v1030 = vmax.f32 %v677, 0.0
  %v1031 = vmax.f32 %v846, 0.0
  %v1032 = vmax.f32 %v510, 0.0
  %v1033 = vmax.f32 %v679, 0.0
  %v1034 = vmax.f32 %v848, 0.0
  %v1035 = vmax.f32 %v513, 0.0
  %v1036 = vmax.f32 %v682, 0.0
  %v1037 = vmax.f32 %v851, 0.0
  %v1038 = vmax.f32 %v515, 0.0
  %v1039 = vmax.f32 %v684, 0.0
  %v1040 = vmax.f32 %v853, 0.0
  %v1041 = vmax.f32 %v518, 0.0
  %v1042 = vmax.f32 %v687, 0.0
  %v1043 = vmax.f32 %v856, 0.0
  %v1044 = vmax.f32 %v520, 0.0
  %v1045 = vmax.f32 %v689, 0.0
  %v1046 = vmax.f32 %v858, 0.0
  %v1047 = vmax.f32 %v523, 0.0
  %v1048 = vmax.f32 %v692, 0.0
  %v1049 = vmax.f32 %v861, 0.0
  %v1050 = vmax.f32 %v525, 0.0
  %v1051 = vmax.f32 %v694, 0.0
  %v1052 = vmax.f32 %v863, 0.0
  %v1053 = vmax.f32 %v528, 0.0
  %v1054 = vmax.f32 %v697, 0.0
  %v1055 = vmax.f32 %v866, 0.0
  %v1056 = vmax.f32 %v530, 0.0
  %v1057 = vmax.f32 %v699, 0.0
  %v1058 = vmax.f32 %v868, 0.0
  %v1059 = vmax.f32 %v533, 0.0
  %v1060 = vmax.f32 %v702, 0.0
  %v1061 = vmax.f32 %v871, 0.0
  %v1062 = vmax.f32 %v535, 0.0
  %v1063 = vmax.f32 %v704, 0.0
  %v1064 = vmax.f32 %v873, 0.0
  %v1065 = vmax.f32 %v538, 0.0
  %v1066 = vmax.f32 %v707, 0.0
  %v1067 = vmax.f32 %v876, 0.0
  %v1068 = vmax.f32 %v540, 0.0
  %v1069 = vmax.f32 %v709, 0.0
  %v1070 = vmax.f32 %v878, 0.0
  %v1071 = vmax.f32 %v543, 0.0
  %v1072 = vmax.f32 %v712, 0.0
  %v1073 = vmax.f32 %v881, 0.0
  %v1074 = vmax.f32 %v545, 0.0
  %v1075 = vmax.f32 %v714, 0.0
  %v1076 = vmax.f32 %v883, 0.0
  %v1077 = vld [vmem:[%s1] sm:$0x1]
  %v1078 = vld [vmem:[%s3] sm:$0xff]
  %v1079 = vld [vmem:[%s3 + $0x8] sm:$0xff]
  %v1080 = vld [vmem:[%s3 + $0x10] sm:$0xff]
  %v1081 = vld [vmem:[%s3 + $0x18] sm:$0xff]
  %v1082 = vld [vmem:[%s3 + $0x20] sm:$0xff]
  %v1083 = vld [vmem:[%s3 + $0x28] sm:$0xff]
  %v1084 = vld [vmem:[%s3 + $0x30] sm:$0xff]
  %v1085 = vld [vmem:[%s3 + $0x38] sm:$0xff]
  %v1086 = vld [vmem:[%s3 + $0x40] sm:$0xff]
  %v1087 = vld [vmem:[%s3 + $0x48] sm:$0xff]
  %v1088 = vld [vmem:[%s3 + $0x50] sm:$0xff]
  %v1089 = vld [vmem:[%s3 + $0x58] sm:$0xff]
  %v1090 = vld [vmem:[%s3 + $0x60] sm:$0xff]
  %v1091 = vld [vmem:[%s3 + $0x68] sm:$0xff]
  %v1092 = vld [vmem:[%s3 + $0x70] sm:$0xff]
  %v1093 = vld [vmem:[%s3 + $0x78] sm:$0xff]
  %v1095 = vperm.slane %v34, 0
  %v1096 = vperm.slane %v34, 1
  %v1115 = vunpack.c.l.b16 %v1078
  %v1116 = vunpack.c.h.b16 %v1078
  %v1117 = vunpack.c.l.b16 %v1079
  %v1118 = vunpack.c.h.b16 %v1079
  %v1119 = vunpack.c.l.b16 %v1080
  %v1120 = vunpack.c.h.b16 %v1080
  %v1121 = vunpack.c.l.b16 %v1081
  %v1122 = vunpack.c.h.b16 %v1081
  %v1123 = vunpack.c.l.b16 %v1082
  %v1124 = vunpack.c.h.b16 %v1082
  %v1125 = vunpack.c.l.b16 %v1083
  %v1126 = vunpack.c.h.b16 %v1083
  %v1127 = vunpack.c.l.b16 %v1084
  %v1128 = vunpack.c.h.b16 %v1084
  %v1129 = vunpack.c.l.b16 %v1085
  %v1130 = vunpack.c.h.b16 %v1085
  %v1131 = vunpack.c.l.b16 %v1086
  %v1132 = vunpack.c.h.b16 %v1086
  %v1133 = vunpack.c.l.b16 %v1087
  %v1134 = vunpack.c.h.b16 %v1087
  %v1135 = vunpack.c.l.b16 %v1088
  %v1136 = vunpack.c.h.b16 %v1088
  %v1137 = vunpack.c.l.b16 %v1089
  %v1138 = vunpack.c.h.b16 %v1089
  %v1139 = vunpack.c.l.b16 %v1090
  %v1140 = vunpack.c.h.b16 %v1090
  %v1141 = vunpack.c.l.b16 %v1091
  %v1142 = vunpack.c.h.b16 %v1091
  %v1143 = vunpack.c.l.b16 %v1092
  %v1144 = vunpack.c.h.b16 %v1092
  %v1145 = vunpack.c.l.b16 %v1093
  %v1146 = vunpack.c.h.b16 %v1093
  %v1147 = vpack.c.b16 %v1117, %v1115
  %v1148 = vpack.c.b16 %v1118, %v1116
  %v1149 = vpack.c.b16 %v1121, %v1119
  %v1150 = vpack.c.b16 %v1122, %v1120
  %v1151 = vpack.c.b16 %v1125, %v1123
  %v1152 = vpack.c.b16 %v1126, %v1124
  %v1153 = vpack.c.b16 %v1129, %v1127
  %v1154 = vpack.c.b16 %v1130, %v1128
  %v1155 = vpack.c.b16 %v1133, %v1131
  %v1156 = vpack.c.b16 %v1134, %v1132
  %v1157 = vpack.c.b16 %v1137, %v1135
  %v1158 = vpack.c.b16 %v1138, %v1136
  %v1159 = vpack.c.b16 %v1141, %v1139
  %v1160 = vpack.c.b16 %v1142, %v1140
  %v1161 = vpack.c.b16 %v1145, %v1143
  %v1162 = vpack.c.b16 %v1146, %v1144
  %1179 = vmatpush.bf16.msra.mxu0 %v1161
  %1180 = vmatpush.bf16.msra.mxu0 %v1159
  %1181 = vmatpush.bf16.msra.mxu0 %v1157
  %1182 = vmatpush.bf16.msra.mxu0 %v1155
  %1183 = vmatpush.bf16.msra.mxu0 %v1153
  %1184 = vmatpush.bf16.msra.mxu0 %v1151
  %1185 = vmatpush.bf16.msra.mxu0 %v1149
  %1186 = vmatpush.bf16.msra.mxu0 %v1147
  %1187 = vmatmul.bf16.gmra.mxu0 %v1077
  %v1188 = vpop.f32.mrf.mxu0
  %v1189 = vadd.f32 %v1095, %v1188
  %v1190 = vpop.f32.mrf.mxu0
  %1191 = vdwg.mxu0
  %1192 = vmatpush.bf16.msra.mxu0 %v1162
  %1193 = vmatpush.bf16.msra.mxu0 %v1160
  %1194 = vmatpush.bf16.msra.mxu0 %v1158
  %1195 = vmatpush.bf16.msra.mxu0 %v1156
  %1196 = vmatpush.bf16.msra.mxu0 %v1154
  %1197 = vmatpush.bf16.msra.mxu0 %v1152
  %1198 = vmatpush.bf16.msra.mxu0 %v1150
  %1199 = vmatpush.bf16.msra.mxu0 %v1148
  %1200 = vmatmul.bf16.gmra.mxu0 %v1077
  %v1201 = vpop.f32.mrf.mxu0
  %v1202 = vadd.f32 %v1096, %v1201
  %v1203 = vpop.f32.mrf.mxu0
  %1204 = vdwg.mxu0
  %v1205 = vmax.f32 %v1189, 0.0
  %v1206 = vmax.f32 %v1202, 0.0
  %v1207 = vpack.c.bf16 %v1205, %v1205
  %v1208 = vpack.c.bf16 %v1206, %v1206
  %v1209 = vld [vmem:[%s4] sm:$0xff]
  %v1210 = vld [vmem:[%s4 + $0x8] sm:$0xff]
  %v1211 = vld [vmem:[%s4 + $0x10] sm:$0xff]
  %v1212 = vld [vmem:[%s4 + $0x18] sm:$0xff]
  %v1213 = vld [vmem:[%s4 + $0x20] sm:$0xff]
  %v1214 = vld [vmem:[%s4 + $0x28] sm:$0xff]
  %v1215 = vld [vmem:[%s4 + $0x30] sm:$0xff]
  %v1216 = vld [vmem:[%s4 + $0x38] sm:$0xff]
  %v1217 = vld [vmem:[%s4 + $0x40] sm:$0xff]
  %v1218 = vld [vmem:[%s4 + $0x48] sm:$0xff]
  %v1219 = vld [vmem:[%s4 + $0x50] sm:$0xff]
  %v1220 = vld [vmem:[%s4 + $0x58] sm:$0xff]
  %v1221 = vld [vmem:[%s4 + $0x60] sm:$0xff]
  %v1222 = vld [vmem:[%s4 + $0x68] sm:$0xff]
  %v1223 = vld [vmem:[%s4 + $0x70] sm:$0xff]
  %v1224 = vld [vmem:[%s4 + $0x78] sm:$0xff]
  %v1225 = vld [vmem:[%s4 + $0x80] sm:$0xff]
  %v1226 = vld [vmem:[%s4 + $0x88] sm:$0xff]
  %v1227 = vld [vmem:[%s4 + $0x90] sm:$0xff]
  %v1228 = vld [vmem:[%s4 + $0x98] sm:$0xff]
  %v1229 = vld [vmem:[%s4 + $0xa0] sm:$0xff]
  %v1230 = vld [vmem:[%s4 + $0xa8] sm:$0xff]
  %v1231 = vld [vmem:[%s4 + $0xb0] sm:$0xff]
  %v1232 = vld [vmem:[%s4 + $0xb8] sm:$0xff]
  %v1233 = vld [vmem:[%s4 + $0xc0] sm:$0xff]
  %v1234 = vld [vmem:[%s4 + $0xc8] sm:$0xff]
  %v1235 = vld [vmem:[%s4 + $0xd0] sm:$0xff]
  %v1236 = vld [vmem:[%s4 + $0xd8] sm:$0xff]
  %v1237 = vld [vmem:[%s4 + $0xe0] sm:$0xff]
  %v1238 = vld [vmem:[%s4 + $0xe8] sm:$0xff]
  %v1239 = vld [vmem:[%s4 + $0xf0] sm:$0xff]
  %v1240 = vld [vmem:[%s4 + $0xf8] sm:$0xff]
  %v1242 = vperm.slane %v35, 0
  %v1243 = vperm.slane %v35, 1
  %v1278 = vunpack.c.l.b16 %v1209
  %v1279 = vunpack.c.h.b16 %v1209
  %v1280 = vunpack.c.l.b16 %v1210
  %v1281 = vunpack.c.h.b16 %v1210
  %v1282 = vunpack.c.l.b16 %v1211
  %v1283 = vunpack.c.h.b16 %v1211
  %v1284 = vunpack.c.l.b16 %v1212
  %v1285 = vunpack.c.h.b16 %v1212
  %v1286 = vunpack.c.l.b16 %v1213
  %v1287 = vunpack.c.h.b16 %v1213
  %v1288 = vunpack.c.l.b16 %v1214
  %v1289 = vunpack.c.h.b16 %v1214
  %v1290 = vunpack.c.l.b16 %v1215
  %v1291 = vunpack.c.h.b16 %v1215
  %v1292 = vunpack.c.l.b16 %v1216
  %v1293 = vunpack.c.h.b16 %v1216
  %v1294 = vunpack.c.l.b16 %v1217
  %v1295 = vunpack.c.h.b16 %v1217
  %v1296 = vunpack.c.l.b16 %v1218
  %v1297 = vunpack.c.h.b16 %v1218
  %v1298 = vunpack.c.l.b16 %v1219
  %v1299 = vunpack.c.h.b16 %v1219
  %v1300 = vunpack.c.l.b16 %v1220
  %v1301 = vunpack.c.h.b16 %v1220
  %v1302 = vunpack.c.l.b16 %v1221
  %v1303 = vunpack.c.h.b16 %v1221
  %v1304 = vunpack.c.l.b16 %v1222
  %v1305 = vunpack.c.h.b16 %v1222
  %v1306 = vunpack.c.l.b16 %v1223
  %v1307 = vunpack.c.h.b16 %v1223
  %v1308 = vunpack.c.l.b16 %v1224
  %v1309 = vunpack.c.h.b16 %v1224
  %v1310 = vunpack.c.l.b16 %v1225
  %v1311 = vunpack.c.h.b16 %v1225
  %v1312 = vunpack.c.l.b16 %v1226
  %v1313 = vunpack.c.h.b16 %v1226
  %v1314 = vunpack.c.l.b16 %v1227
  %v1315 = vunpack.c.h.b16 %v1227
  %v1316 = vunpack.c.l.b16 %v1228
  %v1317 = vunpack.c.h.b16 %v1228
  %v1318 = vunpack.c.l.b16 %v1229
  %v1319 = vunpack.c.h.b16 %v1229
  %v1320 = vunpack.c.l.b16 %v1230
  %v1321 = vunpack.c.h.b16 %v1230
  %v1322 = vunpack.c.l.b16 %v1231
  %v1323 = vunpack.c.h.b16 %v1231
  %v1324 = vunpack.c.l.b16 %v1232
  %v1325 = vunpack.c.h.b16 %v1232
  %v1326 = vunpack.c.l.b16 %v1233
  %v1327 = vunpack.c.h.b16 %v1233
  %v1328 = vunpack.c.l.b16 %v1234
  %v1329 = vunpack.c.h.b16 %v1234
  %v1330 = vunpack.c.l.b16 %v1235
  %v1331 = vunpack.c.h.b16 %v1235
  %v1332 = vunpack.c.l.b16 %v1236
  %v1333 = vunpack.c.h.b16 %v1236
  %v1334 = vunpack.c.l.b16 %v1237
  %v1335 = vunpack.c.h.b16 %v1237
  %v1336 = vunpack.c.l.b16 %v1238
  %v1337 = vunpack.c.h.b16 %v1238
  %v1338 = vunpack.c.l.b16 %v1239
  %v1339 = vunpack.c.h.b16 %v1239
  %v1340 = vunpack.c.l.b16 %v1240
  %v1341 = vunpack.c.h.b16 %v1240
  %v1342 = vpack.c.b16 %v1280, %v1278
  %v1343 = vpack.c.b16 %v1281, %v1279
  %v1344 = vpack.c.b16 %v1284, %v1282
  %v1345 = vpack.c.b16 %v1285, %v1283
  %v1346 = vpack.c.b16 %v1288, %v1286
  %v1347 = vpack.c.b16 %v1289, %v1287
  %v1348 = vpack.c.b16 %v1292, %v1290
  %v1349 = vpack.c.b16 %v1293, %v1291
  %v1350 = vpack.c.b16 %v1296, %v1294
  %v1351 = vpack.c.b16 %v1297, %v1295
  %v1352 = vpack.c.b16 %v1300, %v1298
  %v1353 = vpack.c.b16 %v1301, %v1299
  %v1354 = vpack.c.b16 %v1304, %v1302
  %v1355 = vpack.c.b16 %v1305, %v1303
  %v1356 = vpack.c.b16 %v1308, %v1306
  %v1357 = vpack.c.b16 %v1309, %v1307
  %v1358 = vpack.c.b16 %v1312, %v1310
  %v1359 = vpack.c.b16 %v1313, %v1311
  %v1360 = vpack.c.b16 %v1316, %v1314
  %v1361 = vpack.c.b16 %v1317, %v1315
  %v1362 = vpack.c.b16 %v1320, %v1318
  %v1363 = vpack.c.b16 %v1321, %v1319
  %v1364 = vpack.c.b16 %v1324, %v1322
  %v1365 = vpack.c.b16 %v1325, %v1323
  %v1366 = vpack.c.b16 %v1328, %v1326
  %v1367 = vpack.c.b16 %v1329, %v1327
  %v1368 = vpack.c.b16 %v1332, %v1330
  %v1369 = vpack.c.b16 %v1333, %v1331
  %v1370 = vpack.c.b16 %v1336, %v1334
  %v1371 = vpack.c.b16 %v1337, %v1335
  %v1372 = vpack.c.b16 %v1340, %v1338
  %v1373 = vpack.c.b16 %v1341, %v1339
  %1406 = vmatpush.bf16.msra.mxu0 %v1356
  %1407 = vmatpush.bf16.msra.mxu0 %v1354
  %1408 = vmatpush.bf16.msra.mxu0 %v1352
  %1409 = vmatpush.bf16.msra.mxu0 %v1350
  %1410 = vmatpush.bf16.msra.mxu0 %v1348
  %1411 = vmatpush.bf16.msra.mxu0 %v1346
  %1412 = vmatpush.bf16.msra.mxu0 %v1344
  %1413 = vmatpush.bf16.msra.mxu0 %v1342
  %1414 = vmatmul.bf16.gmra.mxu0 %v1207
  %v1415 = vpop.f32.mrf.mxu0
  %v1416 = vadd.f32 %v1242, %v1415
  %v1417 = vpop.f32.mrf.mxu0
  %1418 = vdwg.mxu0
  %1419 = vmatpush.bf16.msra.mxu0 %v1372
  %1420 = vmatpush.bf16.msra.mxu0 %v1370
  %1421 = vmatpush.bf16.msra.mxu0 %v1368
  %1422 = vmatpush.bf16.msra.mxu0 %v1366
  %1423 = vmatpush.bf16.msra.mxu0 %v1364
  %1424 = vmatpush.bf16.msra.mxu0 %v1362
  %1425 = vmatpush.bf16.msra.mxu0 %v1360
  %1426 = vmatpush.bf16.msra.mxu0 %v1358
  %1427 = vmatmul.bf16.gmra.mxu0 %v1208
  %v1428 = vpop.f32.mrf.mxu0
  %v1429 = vadd.f32 %v1416, %v1428
  %v1430 = vpop.f32.mrf.mxu0
  %1431 = vdwg.mxu0
  %1432 = vmatpush.bf16.msra.mxu0 %v1357
  %1433 = vmatpush.bf16.msra.mxu0 %v1355
  %1434 = vmatpush.bf16.msra.mxu0 %v1353
  %1435 = vmatpush.bf16.msra.mxu0 %v1351
  %1436 = vmatpush.bf16.msra.mxu0 %v1349
  %1437 = vmatpush.bf16.msra.mxu0 %v1347
  %1438 = vmatpush.bf16.msra.mxu0 %v1345
  %1439 = vmatpush.bf16.msra.mxu0 %v1343
  %1440 = vmatmul.bf16.gmra.mxu0 %v1207
  %v1441 = vpop.f32.mrf.mxu0
  %v1442 = vadd.f32 %v1243, %v1441
  %v1443 = vpop.f32.mrf.mxu0
  %1444 = vdwg.mxu0
  %1445 = vmatpush.bf16.msra.mxu0 %v1373
  %1446 = vmatpush.bf16.msra.mxu0 %v1371
  %1447 = vmatpush.bf16.msra.mxu0 %v1369
  %1448 = vmatpush.bf16.msra.mxu0 %v1367
  %1449 = vmatpush.bf16.msra.mxu0 %v1365
  %1450 = vmatpush.bf16.msra.mxu0 %v1363
  %1451 = vmatpush.bf16.msra.mxu0 %v1361
  %1452 = vmatpush.bf16.msra.mxu0 %v1359
  %1453 = vmatmul.bf16.gmra.mxu0 %v1208
  %v1454 = vpop.f32.mrf.mxu0
  %v1455 = vadd.f32 %v1442, %v1454
  %v1456 = vpop.f32.mrf.mxu0
  %1457 = vdwg.mxu0
  %v1458 = vmax.f32 %v1429, 0.0
  %v1459 = vmax.f32 %v1455, 0.0
  %v1460 = vpack.c.bf16 %v1458, %v1458
  %v1461 = vpack.c.bf16 %v1459, %v1459
  %v1462 = vld [vmem:[%s5] sm:$0xff]
  %v1463 = vld [vmem:[%s5 + $0x8] sm:$0xff]
  %v1464 = vld [vmem:[%s5 + $0x10] sm:$0xff]
  %v1465 = vld [vmem:[%s5 + $0x18] sm:$0xff]
  %v1466 = vld [vmem:[%s5 + $0x20] sm:$0xff]
  %v1467 = vld [vmem:[%s5 + $0x28] sm:$0xff]
  %v1468 = vld [vmem:[%s5 + $0x30] sm:$0xff]
  %v1469 = vld [vmem:[%s5 + $0x38] sm:$0xff]
  %v1470 = vld [vmem:[%s5 + $0x40] sm:$0xff]
  %v1471 = vld [vmem:[%s5 + $0x48] sm:$0xff]
  %v1472 = vld [vmem:[%s5 + $0x50] sm:$0xff]
  %v1473 = vld [vmem:[%s5 + $0x58] sm:$0xff]
  %v1474 = vld [vmem:[%s5 + $0x60] sm:$0xff]
  %v1475 = vld [vmem:[%s5 + $0x68] sm:$0xff]
  %v1476 = vld [vmem:[%s5 + $0x70] sm:$0xff]
  %v1477 = vld [vmem:[%s5 + $0x78] sm:$0xff]
  %v1478 = vld [vmem:[%s5 + $0x80] sm:$0xff]
  %v1479 = vld [vmem:[%s5 + $0x88] sm:$0xff]
  %v1480 = vld [vmem:[%s5 + $0x90] sm:$0xff]
  %v1481 = vld [vmem:[%s5 + $0x98] sm:$0xff]
  %v1482 = vld [vmem:[%s5 + $0xa0] sm:$0xff]
  %v1483 = vld [vmem:[%s5 + $0xa8] sm:$0xff]
  %v1484 = vld [vmem:[%s5 + $0xb0] sm:$0xff]
  %v1485 = vld [vmem:[%s5 + $0xb8] sm:$0xff]
  %v1486 = vld [vmem:[%s5 + $0xc0] sm:$0xff]
  %v1487 = vld [vmem:[%s5 + $0xc8] sm:$0xff]
  %v1488 = vld [vmem:[%s5 + $0xd0] sm:$0xff]
  %v1489 = vld [vmem:[%s5 + $0xd8] sm:$0xff]
  %v1490 = vld [vmem:[%s5 + $0xe0] sm:$0xff]
  %v1491 = vld [vmem:[%s5 + $0xe8] sm:$0xff]
  %v1492 = vld [vmem:[%s5 + $0xf0] sm:$0xff]
  %v1493 = vld [vmem:[%s5 + $0xf8] sm:$0xff]
  %v1494 = vld [vmem:[%s5 + $0x100] sm:$0xff]
  %v1495 = vld [vmem:[%s5 + $0x108] sm:$0xff]
  %v1496 = vld [vmem:[%s5 + $0x110] sm:$0xff]
  %v1497 = vld [vmem:[%s5 + $0x118] sm:$0xff]
  %v1498 = vld [vmem:[%s5 + $0x120] sm:$0xff]
  %v1499 = vld [vmem:[%s5 + $0x128] sm:$0xff]
  %v1500 = vld [vmem:[%s5 + $0x130] sm:$0xff]
  %v1501 = vld [vmem:[%s5 + $0x138] sm:$0xff]
  %v1502 = vld [vmem:[%s5 + $0x140] sm:$0xff]
  %v1503 = vld [vmem:[%s5 + $0x148] sm:$0xff]
  %v1504 = vld [vmem:[%s5 + $0x150] sm:$0xff]
  %v1505 = vld [vmem:[%s5 + $0x158] sm:$0xff]
  %v1506 = vld [vmem:[%s5 + $0x160] sm:$0xff]
  %v1507 = vld [vmem:[%s5 + $0x168] sm:$0xff]
  %v1508 = vld [vmem:[%s5 + $0x170] sm:$0xff]
  %v1509 = vld [vmem:[%s5 + $0x178] sm:$0xff]
  %v1510 = vld [vmem:[%s5 + $0x180] sm:$0xff]
  %v1511 = vld [vmem:[%s5 + $0x188] sm:$0xff]
  %v1512 = vld [vmem:[%s5 + $0x190] sm:$0xff]
  %v1513 = vld [vmem:[%s5 + $0x198] sm:$0xff]
  %v1514 = vld [vmem:[%s5 + $0x1a0] sm:$0xff]
  %v1515 = vld [vmem:[%s5 + $0x1a8] sm:$0xff]
  %v1516 = vld [vmem:[%s5 + $0x1b0] sm:$0xff]
  %v1517 = vld [vmem:[%s5 + $0x1b8] sm:$0xff]
  %v1518 = vld [vmem:[%s5 + $0x1c0] sm:$0xff]
  %v1519 = vld [vmem:[%s5 + $0x1c8] sm:$0xff]
  %v1520 = vld [vmem:[%s5 + $0x1d0] sm:$0xff]
  %v1521 = vld [vmem:[%s5 + $0x1d8] sm:$0xff]
  %v1522 = vld [vmem:[%s5 + $0x1e0] sm:$0xff]
  %v1523 = vld [vmem:[%s5 + $0x1e8] sm:$0xff]
  %v1524 = vld [vmem:[%s5 + $0x1f0] sm:$0xff]
  %v1525 = vld [vmem:[%s5 + $0x1f8] sm:$0xff]
  %v1527 = vperm.slane %v36, 0
  %v1528 = vperm.slane %v36, 1
  %v1529 = vperm.slane %v36, 2
  %v1530 = vperm.slane %v36, 3
  %v1599 = vunpack.c.l.b16 %v1462
  %v1600 = vunpack.c.h.b16 %v1462
  %v1601 = vunpack.c.l.b16 %v1463
  %v1602 = vunpack.c.h.b16 %v1463
  %v1603 = vunpack.c.l.b16 %v1464
  %v1604 = vunpack.c.h.b16 %v1464
  %v1605 = vunpack.c.l.b16 %v1465
  %v1606 = vunpack.c.h.b16 %v1465
  %v1607 = vunpack.c.l.b16 %v1466
  %v1608 = vunpack.c.h.b16 %v1466
  %v1609 = vunpack.c.l.b16 %v1467
  %v1610 = vunpack.c.h.b16 %v1467
  %v1611 = vunpack.c.l.b16 %v1468
  %v1612 = vunpack.c.h.b16 %v1468
  %v1613 = vunpack.c.l.b16 %v1469
  %v1614 = vunpack.c.h.b16 %v1469
  %v1615 = vunpack.c.l.b16 %v1470
  %v1616 = vunpack.c.h.b16 %v1470
  %v1617 = vunpack.c.l.b16 %v1471
  %v1618 = vunpack.c.h.b16 %v1471
  %v1619 = vunpack.c.l.b16 %v1472
  %v1620 = vunpack.c.h.b16 %v1472
  %v1621 = vunpack.c.l.b16 %v1473
  %v1622 = vunpack.c.h.b16 %v1473
  %v1623 = vunpack.c.l.b16 %v1474
  %v1624 = vunpack.c.h.b16 %v1474
  %v1625 = vunpack.c.l.b16 %v1475
  %v1626 = vunpack.c.h.b16 %v1475
  %v1627 = vunpack.c.l.b16 %v1476
  %v1628 = vunpack.c.h.b16 %v1476
  %v1629 = vunpack.c.l.b16 %v1477
  %v1630 = vunpack.c.h.b16 %v1477
  %v1631 = vunpack.c.l.b16 %v1478
  %v1632 = vunpack.c.h.b16 %v1478
  %v1633 = vunpack.c.l.b16 %v1479
  %v1634 = vunpack.c.h.b16 %v1479
  %v1635 = vunpack.c.l.b16 %v1480
  %v1636 = vunpack.c.h.b16 %v1480
  %v1637 = vunpack.c.l.b16 %v1481
  %v1638 = vunpack.c.h.b16 %v1481
  %v1639 = vunpack.c.l.b16 %v1482
  %v1640 = vunpack.c.h.b16 %v1482
  %v1641 = vunpack.c.l.b16 %v1483
  %v1642 = vunpack.c.h.b16 %v1483
  %v1643 = vunpack.c.l.b16 %v1484
  %v1644 = vunpack.c.h.b16 %v1484
  %v1645 = vunpack.c.l.b16 %v1485
  %v1646 = vunpack.c.h.b16 %v1485
  %v1647 = vunpack.c.l.b16 %v1486
  %v1648 = vunpack.c.h.b16 %v1486
  %v1649 = vunpack.c.l.b16 %v1487
  %v1650 = vunpack.c.h.b16 %v1487
  %v1651 = vunpack.c.l.b16 %v1488
  %v1652 = vunpack.c.h.b16 %v1488
  %v1653 = vunpack.c.l.b16 %v1489
  %v1654 = vunpack.c.h.b16 %v1489
  %v1655 = vunpack.c.l.b16 %v1490
  %v1656 = vunpack.c.h.b16 %v1490
  %v1657 = vunpack.c.l.b16 %v1491
  %v1658 = vunpack.c.h.b16 %v1491
  %v1659 = vunpack.c.l.b16 %v1492
  %v1660 = vunpack.c.h.b16 %v1492
  %v1661 = vunpack.c.l.b16 %v1493
  %v1662 = vunpack.c.h.b16 %v1493
  %v1663 = vunpack.c.l.b16 %v1494
  %v1664 = vunpack.c.h.b16 %v1494
  %v1665 = vunpack.c.l.b16 %v1495
  %v1666 = vunpack.c.h.b16 %v1495
  %v1667 = vunpack.c.l.b16 %v1496
  %v1668 = vunpack.c.h.b16 %v1496
  %v1669 = vunpack.c.l.b16 %v1497
  %v1670 = vunpack.c.h.b16 %v1497
  %v1671 = vunpack.c.l.b16 %v1498
  %v1672 = vunpack.c.h.b16 %v1498
  %v1673 = vunpack.c.l.b16 %v1499
  %v1674 = vunpack.c.h.b16 %v1499
  %v1675 = vunpack.c.l.b16 %v1500
  %v1676 = vunpack.c.h.b16 %v1500
  %v1677 = vunpack.c.l.b16 %v1501
  %v1678 = vunpack.c.h.b16 %v1501
  %v1679 = vunpack.c.l.b16 %v1502
  %v1680 = vunpack.c.h.b16 %v1502
  %v1681 = vunpack.c.l.b16 %v1503
  %v1682 = vunpack.c.h.b16 %v1503
  %v1683 = vunpack.c.l.b16 %v1504
  %v1684 = vunpack.c.h.b16 %v1504
  %v1685 = vunpack.c.l.b16 %v1505
  %v1686 = vunpack.c.h.b16 %v1505
  %v1687 = vunpack.c.l.b16 %v1506
  %v1688 = vunpack.c.h.b16 %v1506
  %v1689 = vunpack.c.l.b16 %v1507
  %v1690 = vunpack.c.h.b16 %v1507
  %v1691 = vunpack.c.l.b16 %v1508
  %v1692 = vunpack.c.h.b16 %v1508
  %v1693 = vunpack.c.l.b16 %v1509
  %v1694 = vunpack.c.h.b16 %v1509
  %v1695 = vunpack.c.l.b16 %v1510
  %v1696 = vunpack.c.h.b16 %v1510
  %v1697 = vunpack.c.l.b16 %v1511
  %v1698 = vunpack.c.h.b16 %v1511
  %v1699 = vunpack.c.l.b16 %v1512
  %v1700 = vunpack.c.h.b16 %v1512
  %v1701 = vunpack.c.l.b16 %v1513
  %v1702 = vunpack.c.h.b16 %v1513
  %v1703 = vunpack.c.l.b16 %v1514
  %v1704 = vunpack.c.h.b16 %v1514
  %v1705 = vunpack.c.l.b16 %v1515
  %v1706 = vunpack.c.h.b16 %v1515
  %v1707 = vunpack.c.l.b16 %v1516
  %v1708 = vunpack.c.h.b16 %v1516
  %v1709 = vunpack.c.l.b16 %v1517
  %v1710 = vunpack.c.h.b16 %v1517
  %v1711 = vunpack.c.l.b16 %v1518
  %v1712 = vunpack.c.h.b16 %v1518
  %v1713 = vunpack.c.l.b16 %v1519
  %v1714 = vunpack.c.h.b16 %v1519
  %v1715 = vunpack.c.l.b16 %v1520
  %v1716 = vunpack.c.h.b16 %v1520
  %v1717 = vunpack.c.l.b16 %v1521
  %v1718 = vunpack.c.h.b16 %v1521
  %v1719 = vunpack.c.l.b16 %v1522
  %v1720 = vunpack.c.h.b16 %v1522
  %v1721 = vunpack.c.l.b16 %v1523
  %v1722 = vunpack.c.h.b16 %v1523
  %v1723 = vunpack.c.l.b16 %v1524
  %v1724 = vunpack.c.h.b16 %v1524
  %v1725 = vunpack.c.l.b16 %v1525
  %v1726 = vunpack.c.h.b16 %v1525
  %v1727 = vpack.c.b16 %v1603, %v1599
  %v1728 = vpack.c.b16 %v1604, %v1600
  %v1729 = vpack.c.b16 %v1605, %v1601
  %v1730 = vpack.c.b16 %v1606, %v1602
  %v1731 = vpack.c.b16 %v1611, %v1607
  %v1732 = vpack.c.b16 %v1612, %v1608
  %v1733 = vpack.c.b16 %v1613, %v1609
  %v1734 = vpack.c.b16 %v1614, %v1610
  %v1735 = vpack.c.b16 %v1619, %v1615
  %v1736 = vpack.c.b16 %v1620, %v1616
  %v1737 = vpack.c.b16 %v1621, %v1617
  %v1738 = vpack.c.b16 %v1622, %v1618
  %v1739 = vpack.c.b16 %v1627, %v1623
  %v1740 = vpack.c.b16 %v1628, %v1624
  %v1741 = vpack.c.b16 %v1629, %v1625
  %v1742 = vpack.c.b16 %v1630, %v1626
  %v1743 = vpack.c.b16 %v1635, %v1631
  %v1744 = vpack.c.b16 %v1636, %v1632
  %v1745 = vpack.c.b16 %v1637, %v1633
  %v1746 = vpack.c.b16 %v1638, %v1634
  %v1747 = vpack.c.b16 %v1643, %v1639
  %v1748 = vpack.c.b16 %v1644, %v1640
  %v1749 = vpack.c.b16 %v1645, %v1641
  %v1750 = vpack.c.b16 %v1646, %v1642
  %v1751 = vpack.c.b16 %v1651, %v1647
  %v1752 = vpack.c.b16 %v1652, %v1648
  %v1753 = vpack.c.b16 %v1653, %v1649
  %v1754 = vpack.c.b16 %v1654, %v1650
  %v1755 = vpack.c.b16 %v1659, %v1655
  %v1756 = vpack.c.b16 %v1660, %v1656
  %v1757 = vpack.c.b16 %v1661, %v1657
  %v1758 = vpack.c.b16 %v1662, %v1658
  %v1759 = vpack.c.b16 %v1667, %v1663
  %v1760 = vpack.c.b16 %v1668, %v1664
  %v1761 = vpack.c.b16 %v1669, %v1665
  %v1762 = vpack.c.b16 %v1670, %v1666
  %v1763 = vpack.c.b16 %v1675, %v1671
  %v1764 = vpack.c.b16 %v1676, %v1672
  %v1765 = vpack.c.b16 %v1677, %v1673
  %v1766 = vpack.c.b16 %v1678, %v1674
  %v1767 = vpack.c.b16 %v1683, %v1679
  %v1768 = vpack.c.b16 %v1684, %v1680
  %v1769 = vpack.c.b16 %v1685, %v1681
  %v1770 = vpack.c.b16 %v1686, %v1682
  %v1771 = vpack.c.b16 %v1691, %v1687
  %v1772 = vpack.c.b16 %v1692, %v1688
  %v1773 = vpack.c.b16 %v1693, %v1689
  %v1774 = vpack.c.b16 %v1694, %v1690
  %v1775 = vpack.c.b16 %v1699, %v1695
  %v1776 = vpack.c.b16 %v1700, %v1696
  %v1777 = vpack.c.b16 %v1701, %v1697
  %v1778 = vpack.c.b16 %v1702, %v1698
  %v1779 = vpack.c.b16 %v1707, %v1703
  %v1780 = vpack.c.b16 %v1708, %v1704
  %v1781 = vpack.c.b16 %v1709, %v1705
  %v1782 = vpack.c.b16 %v1710, %v1706
  %v1783 = vpack.c.b16 %v1715, %v1711
  %v1784 = vpack.c.b16 %v1716, %v1712
  %v1785 = vpack.c.b16 %v1717, %v1713
  %v1786 = vpack.c.b16 %v1718, %v1714
  %v1787 = vpack.c.b16 %v1723, %v1719
  %v1788 = vpack.c.b16 %v1724, %v1720
  %v1789 = vpack.c.b16 %v1725, %v1721
  %v1790 = vpack.c.b16 %v1726, %v1722
  %1855 = vmatpush.bf16.msra.mxu0 %v1755
  %1856 = vmatpush.bf16.msra.mxu0 %v1751
  %1857 = vmatpush.bf16.msra.mxu0 %v1747
  %1858 = vmatpush.bf16.msra.mxu0 %v1743
  %1859 = vmatpush.bf16.msra.mxu0 %v1739
  %1860 = vmatpush.bf16.msra.mxu0 %v1735
  %1861 = vmatpush.bf16.msra.mxu0 %v1731
  %1862 = vmatpush.bf16.msra.mxu0 %v1727
  %1863 = vmatmul.bf16.gmra.mxu0 %v1460
  %v1864 = vpop.f32.mrf.mxu0
  %v1865 = vadd.f32 %v1527, %v1864
  %v1866 = vpop.f32.mrf.mxu0
  %1867 = vdwg.mxu0
  %1868 = vmatpush.bf16.msra.mxu0 %v1787
  %1869 = vmatpush.bf16.msra.mxu0 %v1783
  %1870 = vmatpush.bf16.msra.mxu0 %v1779
  %1871 = vmatpush.bf16.msra.mxu0 %v1775
  %1872 = vmatpush.bf16.msra.mxu0 %v1771
  %1873 = vmatpush.bf16.msra.mxu0 %v1767
  %1874 = vmatpush.bf16.msra.mxu0 %v1763
  %1875 = vmatpush.bf16.msra.mxu0 %v1759
  %1876 = vmatmul.bf16.gmra.mxu0 %v1461
  %v1877 = vpop.f32.mrf.mxu0
  %v1878 = vadd.f32 %v1865, %v1877
  %v1879 = vpop.f32.mrf.mxu0
  %1880 = vdwg.mxu0
  %1881 = vmatpush.bf16.msra.mxu0 %v1756
  %1882 = vmatpush.bf16.msra.mxu0 %v1752
  %1883 = vmatpush.bf16.msra.mxu0 %v1748
  %1884 = vmatpush.bf16.msra.mxu0 %v1744
  %1885 = vmatpush.bf16.msra.mxu0 %v1740
  %1886 = vmatpush.bf16.msra.mxu0 %v1736
  %1887 = vmatpush.bf16.msra.mxu0 %v1732
  %1888 = vmatpush.bf16.msra.mxu0 %v1728
  %1889 = vmatmul.bf16.gmra.mxu0 %v1460
  %v1890 = vpop.f32.mrf.mxu0
  %v1891 = vadd.f32 %v1528, %v1890
  %v1892 = vpop.f32.mrf.mxu0
  %1893 = vdwg.mxu0
  %1894 = vmatpush.bf16.msra.mxu0 %v1788
  %1895 = vmatpush.bf16.msra.mxu0 %v1784
  %1896 = vmatpush.bf16.msra.mxu0 %v1780
  %1897 = vmatpush.bf16.msra.mxu0 %v1776
  %1898 = vmatpush.bf16.msra.mxu0 %v1772
  %1899 = vmatpush.bf16.msra.mxu0 %v1768
  %1900 = vmatpush.bf16.msra.mxu0 %v1764
  %1901 = vmatpush.bf16.msra.mxu0 %v1760
  %1902 = vmatmul.bf16.gmra.mxu0 %v1461
  %v1903 = vpop.f32.mrf.mxu0
  %v1904 = vadd.f32 %v1891, %v1903
  %v1905 = vpop.f32.mrf.mxu0
  %1906 = vdwg.mxu0
  %1907 = vmatpush.bf16.msra.mxu0 %v1757
  %1908 = vmatpush.bf16.msra.mxu0 %v1753
  %1909 = vmatpush.bf16.msra.mxu0 %v1749
  %1910 = vmatpush.bf16.msra.mxu0 %v1745
  %1911 = vmatpush.bf16.msra.mxu0 %v1741
  %1912 = vmatpush.bf16.msra.mxu0 %v1737
  %1913 = vmatpush.bf16.msra.mxu0 %v1733
  %1914 = vmatpush.bf16.msra.mxu0 %v1729
  %1915 = vmatmul.bf16.gmra.mxu0 %v1460
  %v1916 = vpop.f32.mrf.mxu0
  %v1917 = vadd.f32 %v1529, %v1916
  %v1918 = vpop.f32.mrf.mxu0
  %1919 = vdwg.mxu0
  %1920 = vmatpush.bf16.msra.mxu0 %v1789
  %1921 = vmatpush.bf16.msra.mxu0 %v1785
  %1922 = vmatpush.bf16.msra.mxu0 %v1781
  %1923 = vmatpush.bf16.msra.mxu0 %v1777
  %1924 = vmatpush.bf16.msra.mxu0 %v1773
  %1925 = vmatpush.bf16.msra.mxu0 %v1769
  %1926 = vmatpush.bf16.msra.mxu0 %v1765
  %1927 = vmatpush.bf16.msra.mxu0 %v1761
  %1928 = vmatmul.bf16.gmra.mxu0 %v1461
  %v1929 = vpop.f32.mrf.mxu0
  %v1930 = vadd.f32 %v1917, %v1929
  %v1931 = vpop.f32.mrf.mxu0
  %1932 = vdwg.mxu0
  %1933 = vmatpush.bf16.msra.mxu0 %v1758
  %1934 = vmatpush.bf16.msra.mxu0 %v1754
  %1935 = vmatpush.bf16.msra.mxu0 %v1750
  %1936 = vmatpush.bf16.msra.mxu0 %v1746
  %1937 = vmatpush.bf16.msra.mxu0 %v1742
  %1938 = vmatpush.bf16.msra.mxu0 %v1738
  %1939 = vmatpush.bf16.msra.mxu0 %v1734
  %1940 = vmatpush.bf16.msra.mxu0 %v1730
  %1941 = vmatmul.bf16.gmra.mxu0 %v1460
  %v1942 = vpop.f32.mrf.mxu0
  %v1943 = vadd.f32 %v1530, %v1942
  %v1944 = vpop.f32.mrf.mxu0
  %1945 = vdwg.mxu0
  %1946 = vmatpush.bf16.msra.mxu0 %v1790
  %1947 = vmatpush.bf16.msra.mxu0 %v1786
  %1948 = vmatpush.bf16.msra.mxu0 %v1782
  %1949 = vmatpush.bf16.msra.mxu0 %v1778
  %1950 = vmatpush.bf16.msra.mxu0 %v1774
  %1951 = vmatpush.bf16.msra.mxu0 %v1770
  %1952 = vmatpush.bf16.msra.mxu0 %v1766
  %1953 = vmatpush.bf16.msra.mxu0 %v1762
  %1954 = vmatmul.bf16.gmra.mxu0 %v1461
  %v1955 = vpop.f32.mrf.mxu0
  %v1956 = vadd.f32 %v1943, %v1955
  %v1957 = vpop.f32.mrf.mxu0
  %1958 = vdwg.mxu0
  %v1960 = vrot.slane %v1878, 1
  %v1963 = vrot.slane %v1904, 1
  %v1965 = vadd.f32 %v885, %v888
  %v1966 = vadd.f32 %v1965, %v891
  %v1967 = vadd.f32 %v1966, %v894
  %v1968 = vadd.f32 %v1967, %v897
  %v1969 = vadd.f32 %v1968, %v900
  %v1970 = vadd.f32 %v1969, %v903
  %v1971 = vadd.f32 %v1970, %v906
  %v1972 = vadd.f32 %v1971, %v909
  %v1973 = vadd.f32 %v1972, %v912
  %v1974 = vadd.f32 %v1973, %v915
  %v1975 = vadd.f32 %v1974, %v918
  %v1976 = vadd.f32 %v1975, %v921
  %v1977 = vadd.f32 %v1976, %v924
  %v1978 = vadd.f32 %v1977, %v927
  %v1979 = vadd.f32 %v1978, %v930
  %v1980 = vadd.f32 %v1979, %v933
  %v1981 = vadd.f32 %v1980, %v936
  %v1982 = vadd.f32 %v1981, %v939
  %v1983 = vadd.f32 %v1982, %v942
  %v1984 = vadd.f32 %v1983, %v945
  %v1985 = vadd.f32 %v1984, %v948
  %v1986 = vadd.f32 %v1985, %v951
  %v1987 = vadd.f32 %v1986, %v954
  %v1988 = vadd.f32 %v1987, %v957
  %v1989 = vadd.f32 %v1988, %v960
  %v1990 = vadd.f32 %v1989, %v963
  %v1991 = vadd.f32 %v1990, %v966
  %v1992 = vadd.f32 %v1991, %v969
  %v1993 = vadd.f32 %v1992, %v972
  %v1994 = vadd.f32 %v1993, %v975
  %v1995 = vadd.f32 %v1994, %v978
  %v1996 = vrot.slane %v1995, 4
  %v1997 = vadd.f32 %v1995, %v1996
  %v1998 = vrot.slane %v1997, 2
  %v1999 = vadd.f32 %v1997, %v1998
  %v2000 = vrot.slane %v1999, 1
  %v2001 = vadd.f32 %v1999, %v2000
  %v2002 = vadd.f32 %v981, %v984
  %v2003 = vadd.f32 %v2002, %v987
  %v2004 = vadd.f32 %v2003, %v990
  %v2005 = vadd.f32 %v2004, %v993
  %v2006 = vadd.f32 %v2005, %v996
  %v2007 = vadd.f32 %v2006, %v999
  %v2008 = vadd.f32 %v2007, %v1002
  %v2009 = vadd.f32 %v2008, %v1005
  %v2010 = vadd.f32 %v2009, %v1008
  %v2011 = vadd.f32 %v2010, %v1011
  %v2012 = vadd.f32 %v2011, %v1014
  %v2013 = vadd.f32 %v2012, %v1017
  %v2014 = vadd.f32 %v2013, %v1020
  %v2015 = vadd.f32 %v2014, %v1023
  %v2016 = vadd.f32 %v2015, %v1026
  %v2017 = vadd.f32 %v2016, %v1029
  %v2018 = vadd.f32 %v2017, %v1032
  %v2019 = vadd.f32 %v2018, %v1035
  %v2020 = vadd.f32 %v2019, %v1038
  %v2021 = vadd.f32 %v2020, %v1041
  %v2022 = vadd.f32 %v2021, %v1044
  %v2023 = vadd.f32 %v2022, %v1047
  %v2024 = vadd.f32 %v2023, %v1050
  %v2025 = vadd.f32 %v2024, %v1053
  %v2026 = vadd.f32 %v2025, %v1056
  %v2027 = vadd.f32 %v2026, %v1059
  %v2028 = vadd.f32 %v2027, %v1062
  %v2029 = vadd.f32 %v2028, %v1065
  %v2030 = vadd.f32 %v2029, %v1068
  %v2031 = vadd.f32 %v2030, %v1071
  %v2032 = vadd.f32 %v2031, %v1074
  %v2033 = vrot.slane %v2032, 4
  %v2034 = vadd.f32 %v2032, %v2033
  %v2035 = vrot.slane %v2034, 2
  %v2036 = vadd.f32 %v2034, %v2035
  %v2037 = vrot.slane %v2036, 1
  %v2038 = vadd.f32 %v2036, %v2037
  %v2039 = vmul.f32 %v2001, 0.00390625
  %v2040 = vmul.f32 %v2038, 0.00390625
  %v2041 = vmul.f32 %v885, %v885
  %v2042 = vmul.f32 %v888, %v888
  %v2043 = vmul.f32 %v891, %v891
  %v2044 = vmul.f32 %v894, %v894
  %v2045 = vmul.f32 %v897, %v897
  %v2046 = vmul.f32 %v900, %v900
  %v2047 = vmul.f32 %v903, %v903
  %v2048 = vmul.f32 %v906, %v906
  %v2049 = vmul.f32 %v909, %v909
  %v2050 = vmul.f32 %v912, %v912
  %v2051 = vmul.f32 %v915, %v915
  %v2052 = vmul.f32 %v918, %v918
  %v2053 = vmul.f32 %v921, %v921
  %v2054 = vmul.f32 %v924, %v924
  %v2055 = vmul.f32 %v927, %v927
  %v2056 = vmul.f32 %v930, %v930
  %v2057 = vmul.f32 %v933, %v933
  %v2058 = vmul.f32 %v936, %v936
  %v2059 = vmul.f32 %v939, %v939
  %v2060 = vmul.f32 %v942, %v942
  %v2061 = vmul.f32 %v945, %v945
  %v2062 = vmul.f32 %v948, %v948
  %v2063 = vmul.f32 %v951, %v951
  %v2064 = vmul.f32 %v954, %v954
  %v2065 = vmul.f32 %v957, %v957
  %v2066 = vmul.f32 %v960, %v960
  %v2067 = vmul.f32 %v963, %v963
  %v2068 = vmul.f32 %v966, %v966
  %v2069 = vmul.f32 %v969, %v969
  %v2070 = vmul.f32 %v972, %v972
  %v2071 = vmul.f32 %v975, %v975
  %v2072 = vmul.f32 %v978, %v978
  %v2073 = vmul.f32 %v981, %v981
  %v2074 = vmul.f32 %v984, %v984
  %v2075 = vmul.f32 %v987, %v987
  %v2076 = vmul.f32 %v990, %v990
  %v2077 = vmul.f32 %v993, %v993
  %v2078 = vmul.f32 %v996, %v996
  %v2079 = vmul.f32 %v999, %v999
  %v2080 = vmul.f32 %v1002, %v1002
  %v2081 = vmul.f32 %v1005, %v1005
  %v2082 = vmul.f32 %v1008, %v1008
  %v2083 = vmul.f32 %v1011, %v1011
  %v2084 = vmul.f32 %v1014, %v1014
  %v2085 = vmul.f32 %v1017, %v1017
  %v2086 = vmul.f32 %v1020, %v1020
  %v2087 = vmul.f32 %v1023, %v1023
  %v2088 = vmul.f32 %v1026, %v1026
  %v2089 = vmul.f32 %v1029, %v1029
  %v2090 = vmul.f32 %v1032, %v1032
  %v2091 = vmul.f32 %v1035, %v1035
  %v2092 = vmul.f32 %v1038, %v1038
  %v2093 = vmul.f32 %v1041, %v1041
  %v2094 = vmul.f32 %v1044, %v1044
  %v2095 = vmul.f32 %v1047, %v1047
  %v2096 = vmul.f32 %v1050, %v1050
  %v2097 = vmul.f32 %v1053, %v1053
  %v2098 = vmul.f32 %v1056, %v1056
  %v2099 = vmul.f32 %v1059, %v1059
  %v2100 = vmul.f32 %v1062, %v1062
  %v2101 = vmul.f32 %v1065, %v1065
  %v2102 = vmul.f32 %v1068, %v1068
  %v2103 = vmul.f32 %v1071, %v1071
  %v2104 = vmul.f32 %v1074, %v1074
  %v2105 = vadd.f32 %v2041, %v2042
  %v2106 = vadd.f32 %v2105, %v2043
  %v2107 = vadd.f32 %v2106, %v2044
  %v2108 = vadd.f32 %v2107, %v2045
  %v2109 = vadd.f32 %v2108, %v2046
  %v2110 = vadd.f32 %v2109, %v2047
  %v2111 = vadd.f32 %v2110, %v2048
  %v2112 = vadd.f32 %v2111, %v2049
  %v2113 = vadd.f32 %v2112, %v2050
  %v2114 = vadd.f32 %v2113, %v2051
  %v2115 = vadd.f32 %v2114, %v2052
  %v2116 = vadd.f32 %v2115, %v2053
  %v2117 = vadd.f32 %v2116, %v2054
  %v2118 = vadd.f32 %v2117, %v2055
  %v2119 = vadd.f32 %v2118, %v2056
  %v2120 = vadd.f32 %v2119, %v2057
  %v2121 = vadd.f32 %v2120, %v2058
  %v2122 = vadd.f32 %v2121, %v2059
  %v2123 = vadd.f32 %v2122, %v2060
  %v2124 = vadd.f32 %v2123, %v2061
  %v2125 = vadd.f32 %v2124, %v2062
  %v2126 = vadd.f32 %v2125, %v2063
  %v2127 = vadd.f32 %v2126, %v2064
  %v2128 = vadd.f32 %v2127, %v2065
  %v2129 = vadd.f32 %v2128, %v2066
  %v2130 = vadd.f32 %v2129, %v2067
  %v2131 = vadd.f32 %v2130, %v2068
  %v2132 = vadd.f32 %v2131, %v2069
  %v2133 = vadd.f32 %v2132, %v2070
  %v2134 = vadd.f32 %v2133, %v2071
  %v2135 = vadd.f32 %v2134, %v2072
  %v2136 = vrot.slane %v2135, 4
  %v2137 = vadd.f32 %v2135, %v2136
  %v2138 = vrot.slane %v2137, 2
  %v2139 = vadd.f32 %v2137, %v2138
  %v2140 = vrot.slane %v2139, 1
  %v2141 = vadd.f32 %v2139, %v2140
  %v2142 = vadd.f32 %v2073, %v2074
  %v2143 = vadd.f32 %v2142, %v2075
  %v2144 = vadd.f32 %v2143, %v2076
  %v2145 = vadd.f32 %v2144, %v2077
  %v2146 = vadd.f32 %v2145, %v2078
  %v2147 = vadd.f32 %v2146, %v2079
  %v2148 = vadd.f32 %v2147, %v2080
  %v2149 = vadd.f32 %v2148, %v2081
  %v2150 = vadd.f32 %v2149, %v2082
  %v2151 = vadd.f32 %v2150, %v2083
  %v2152 = vadd.f32 %v2151, %v2084
  %v2153 = vadd.f32 %v2152, %v2085
  %v2154 = vadd.f32 %v2153, %v2086
  %v2155 = vadd.f32 %v2154, %v2087
  %v2156 = vadd.f32 %v2155, %v2088
  %v2157 = vadd.f32 %v2156, %v2089
  %v2158 = vadd.f32 %v2157, %v2090
  %v2159 = vadd.f32 %v2158, %v2091
  %v2160 = vadd.f32 %v2159, %v2092
  %v2161 = vadd.f32 %v2160, %v2093
  %v2162 = vadd.f32 %v2161, %v2094
  %v2163 = vadd.f32 %v2162, %v2095
  %v2164 = vadd.f32 %v2163, %v2096
  %v2165 = vadd.f32 %v2164, %v2097
  %v2166 = vadd.f32 %v2165, %v2098
  %v2167 = vadd.f32 %v2166, %v2099
  %v2168 = vadd.f32 %v2167, %v2100
  %v2169 = vadd.f32 %v2168, %v2101
  %v2170 = vadd.f32 %v2169, %v2102
  %v2171 = vadd.f32 %v2170, %v2103
  %v2172 = vadd.f32 %v2171, %v2104
  %v2173 = vrot.slane %v2172, 4
  %v2174 = vadd.f32 %v2172, %v2173
  %v2175 = vrot.slane %v2174, 2
  %v2176 = vadd.f32 %v2174, %v2175
  %v2177 = vrot.slane %v2176, 1
  %v2178 = vadd.f32 %v2176, %v2177
  %v2179 = vmul.f32 %v2141, 0.00390625
  %v2180 = vmul.f32 %v2178, 0.00390625
  %v2181 = vmul.f32 %v2039, %v2039
  %v2182 = vmul.f32 %v2040, %v2040
  %v2183 = vsub.f32 %v2179, %v2181
  %v2184 = vsub.f32 %v2180, %v2182
  %v2185 = vmax.f32 %v2183, 0.0
  %v2186 = vmax.f32 %v2184, 0.0
  %v2187 = vadd.f32 %v2185, 1e-05
  %v2188 = vadd.f32 %v2186, 1e-05
  %v2189 = vrsqrt.pop %v2187
  %v2190 = vmul.f32 %v2189, %v2187
  %v2191 = vmul.f32 %v2190, %v2189
  %v2192 = vmul.f32 0.5, %v2191
  %v2193 = vsub.f32 1.5, %v2192
  %v2194 = vmul.f32 %v2189, %v2193
  %vm2195 = vweird.f32 %v2187
  %vm2196 = vweird.f32 %v2189
  %vm2197 = vmor %vm2195, %vm2196
  %v2198 = vsel %vm2197, %v2189, %v2194
  %v2199 = vrsqrt.pop %v2188
  %v2200 = vmul.f32 %v2199, %v2188
  %v2201 = vmul.f32 %v2200, %v2199
  %v2202 = vmul.f32 0.5, %v2201
  %v2203 = vsub.f32 1.5, %v2202
  %v2204 = vmul.f32 %v2199, %v2203
  %vm2205 = vweird.f32 %v2188
  %vm2206 = vweird.f32 %v2199
  %vm2207 = vmor %vm2205, %vm2206
  %v2208 = vsel %vm2207, %v2199, %v2204
  %v2209 = vmul.f32 %v1904, %v2198
  %v2210 = vmul.f32 %v1963, %v2208
  %v2211 = vmul.f32 %v2039, %v2209
  %v2212 = vmul.f32 %v2040, %v2210
  %v2213 = vsub.f32 %v1878, %v2211
  %v2214 = vsub.f32 %v1960, %v2212
  %v2217 = vperm.slane %v2209, 0
  %v2218 = vperm.slane %v2210, 0
  %v2221 = vmul.f32 %v885, %v2217
  %v2222 = vmul.f32 %v888, %v2217
  %v2223 = vmul.f32 %v891, %v2217
  %v2224 = vmul.f32 %v894, %v2217
  %v2225 = vmul.f32 %v897, %v2217
  %v2226 = vmul.f32 %v900, %v2217
  %v2227 = vmul.f32 %v903, %v2217
  %v2228 = vmul.f32 %v906, %v2217
  %v2229 = vmul.f32 %v909, %v2217
  %v2230 = vmul.f32 %v912, %v2217
  %v2231 = vmul.f32 %v915, %v2217
  %v2232 = vmul.f32 %v918, %v2217
  %v2233 = vmul.f32 %v921, %v2217
  %v2234 = vmul.f32 %v924, %v2217
  %v2235 = vmul.f32 %v927, %v2217
  %v2236 = vmul.f32 %v930, %v2217
  %v2237 = vmul.f32 %v933, %v2217
  %v2238 = vmul.f32 %v936, %v2217
  %v2239 = vmul.f32 %v939, %v2217
  %v2240 = vmul.f32 %v942, %v2217
  %v2241 = vmul.f32 %v945, %v2217
  %v2242 = vmul.f32 %v948, %v2217
  %v2243 = vmul.f32 %v951, %v2217
  %v2244 = vmul.f32 %v954, %v2217
  %v2245 = vmul.f32 %v957, %v2217
  %v2246 = vmul.f32 %v960, %v2217
  %v2247 = vmul.f32 %v963, %v2217
  %v2248 = vmul.f32 %v966, %v2217
  %v2249 = vmul.f32 %v969, %v2217
  %v2250 = vmul.f32 %v972, %v2217
  %v2251 = vmul.f32 %v975, %v2217
  %v2252 = vmul.f32 %v978, %v2217
  %v2253 = vmul.f32 %v981, %v2218
  %v2254 = vmul.f32 %v984, %v2218
  %v2255 = vmul.f32 %v987, %v2218
  %v2256 = vmul.f32 %v990, %v2218
  %v2257 = vmul.f32 %v993, %v2218
  %v2258 = vmul.f32 %v996, %v2218
  %v2259 = vmul.f32 %v999, %v2218
  %v2260 = vmul.f32 %v1002, %v2218
  %v2261 = vmul.f32 %v1005, %v2218
  %v2262 = vmul.f32 %v1008, %v2218
  %v2263 = vmul.f32 %v1011, %v2218
  %v2264 = vmul.f32 %v1014, %v2218
  %v2265 = vmul.f32 %v1017, %v2218
  %v2266 = vmul.f32 %v1020, %v2218
  %v2267 = vmul.f32 %v1023, %v2218
  %v2268 = vmul.f32 %v1026, %v2218
  %v2269 = vmul.f32 %v1029, %v2218
  %v2270 = vmul.f32 %v1032, %v2218
  %v2271 = vmul.f32 %v1035, %v2218
  %v2272 = vmul.f32 %v1038, %v2218
  %v2273 = vmul.f32 %v1041, %v2218
  %v2274 = vmul.f32 %v1044, %v2218
  %v2275 = vmul.f32 %v1047, %v2218
  %v2276 = vmul.f32 %v1050, %v2218
  %v2277 = vmul.f32 %v1053, %v2218
  %v2278 = vmul.f32 %v1056, %v2218
  %v2279 = vmul.f32 %v1059, %v2218
  %v2280 = vmul.f32 %v1062, %v2218
  %v2281 = vmul.f32 %v1065, %v2218
  %v2282 = vmul.f32 %v1068, %v2218
  %v2283 = vmul.f32 %v1071, %v2218
  %v2284 = vmul.f32 %v1074, %v2218
  %v2287 = vperm.slane %v2213, 0
  %v2288 = vperm.slane %v2214, 0
  %v2291 = vadd.f32 %v2221, %v2287
  %v2292 = vadd.f32 %v2222, %v2287
  %v2293 = vadd.f32 %v2223, %v2287
  %v2294 = vadd.f32 %v2224, %v2287
  %v2295 = vadd.f32 %v2225, %v2287
  %v2296 = vadd.f32 %v2226, %v2287
  %v2297 = vadd.f32 %v2227, %v2287
  %v2298 = vadd.f32 %v2228, %v2287
  %v2299 = vadd.f32 %v2229, %v2287
  %v2300 = vadd.f32 %v2230, %v2287
  %v2301 = vadd.f32 %v2231, %v2287
  %v2302 = vadd.f32 %v2232, %v2287
  %v2303 = vadd.f32 %v2233, %v2287
  %v2304 = vadd.f32 %v2234, %v2287
  %v2305 = vadd.f32 %v2235, %v2287
  %v2306 = vadd.f32 %v2236, %v2287
  %v2307 = vadd.f32 %v2237, %v2287
  %v2308 = vadd.f32 %v2238, %v2287
  %v2309 = vadd.f32 %v2239, %v2287
  %v2310 = vadd.f32 %v2240, %v2287
  %v2311 = vadd.f32 %v2241, %v2287
  %v2312 = vadd.f32 %v2242, %v2287
  %v2313 = vadd.f32 %v2243, %v2287
  %v2314 = vadd.f32 %v2244, %v2287
  %v2315 = vadd.f32 %v2245, %v2287
  %v2316 = vadd.f32 %v2246, %v2287
  %v2317 = vadd.f32 %v2247, %v2287
  %v2318 = vadd.f32 %v2248, %v2287
  %v2319 = vadd.f32 %v2249, %v2287
  %v2320 = vadd.f32 %v2250, %v2287
  %v2321 = vadd.f32 %v2251, %v2287
  %v2322 = vadd.f32 %v2252, %v2287
  %v2323 = vadd.f32 %v2253, %v2288
  %v2324 = vadd.f32 %v2254, %v2288
  %v2325 = vadd.f32 %v2255, %v2288
  %v2326 = vadd.f32 %v2256, %v2288
  %v2327 = vadd.f32 %v2257, %v2288
  %v2328 = vadd.f32 %v2258, %v2288
  %v2329 = vadd.f32 %v2259, %v2288
  %v2330 = vadd.f32 %v2260, %v2288
  %v2331 = vadd.f32 %v2261, %v2288
  %v2332 = vadd.f32 %v2262, %v2288
  %v2333 = vadd.f32 %v2263, %v2288
  %v2334 = vadd.f32 %v2264, %v2288
  %v2335 = vadd.f32 %v2265, %v2288
  %v2336 = vadd.f32 %v2266, %v2288
  %v2337 = vadd.f32 %v2267, %v2288
  %v2338 = vadd.f32 %v2268, %v2288
  %v2339 = vadd.f32 %v2269, %v2288
  %v2340 = vadd.f32 %v2270, %v2288
  %v2341 = vadd.f32 %v2271, %v2288
  %v2342 = vadd.f32 %v2272, %v2288
  %v2343 = vadd.f32 %v2273, %v2288
  %v2344 = vadd.f32 %v2274, %v2288
  %v2345 = vadd.f32 %v2275, %v2288
  %v2346 = vadd.f32 %v2276, %v2288
  %v2347 = vadd.f32 %v2277, %v2288
  %v2348 = vadd.f32 %v2278, %v2288
  %v2349 = vadd.f32 %v2279, %v2288
  %v2350 = vadd.f32 %v2280, %v2288
  %v2351 = vadd.f32 %v2281, %v2288
  %v2352 = vadd.f32 %v2282, %v2288
  %v2353 = vadd.f32 %v2283, %v2288
  %v2354 = vadd.f32 %v2284, %v2288
  %v2355 = vmax.f32 %v2291, 0.0
  %v2356 = vmax.f32 %v2292, 0.0
  %v2357 = vmax.f32 %v2293, 0.0
  %v2358 = vmax.f32 %v2294, 0.0
  %v2359 = vmax.f32 %v2295, 0.0
  %v2360 = vmax.f32 %v2296, 0.0
  %v2361 = vmax.f32 %v2297, 0.0
  %v2362 = vmax.f32 %v2298, 0.0
  %v2363 = vmax.f32 %v2299, 0.0
  %v2364 = vmax.f32 %v2300, 0.0
  %v2365 = vmax.f32 %v2301, 0.0
  %v2366 = vmax.f32 %v2302, 0.0
  %v2367 = vmax.f32 %v2303, 0.0
  %v2368 = vmax.f32 %v2304, 0.0
  %v2369 = vmax.f32 %v2305, 0.0
  %v2370 = vmax.f32 %v2306, 0.0
  %v2371 = vmax.f32 %v2307, 0.0
  %v2372 = vmax.f32 %v2308, 0.0
  %v2373 = vmax.f32 %v2309, 0.0
  %v2374 = vmax.f32 %v2310, 0.0
  %v2375 = vmax.f32 %v2311, 0.0
  %v2376 = vmax.f32 %v2312, 0.0
  %v2377 = vmax.f32 %v2313, 0.0
  %v2378 = vmax.f32 %v2314, 0.0
  %v2379 = vmax.f32 %v2315, 0.0
  %v2380 = vmax.f32 %v2316, 0.0
  %v2381 = vmax.f32 %v2317, 0.0
  %v2382 = vmax.f32 %v2318, 0.0
  %v2383 = vmax.f32 %v2319, 0.0
  %v2384 = vmax.f32 %v2320, 0.0
  %v2385 = vmax.f32 %v2321, 0.0
  %v2386 = vmax.f32 %v2322, 0.0
  %v2387 = vmax.f32 %v2323, 0.0
  %v2388 = vmax.f32 %v2324, 0.0
  %v2389 = vmax.f32 %v2325, 0.0
  %v2390 = vmax.f32 %v2326, 0.0
  %v2391 = vmax.f32 %v2327, 0.0
  %v2392 = vmax.f32 %v2328, 0.0
  %v2393 = vmax.f32 %v2329, 0.0
  %v2394 = vmax.f32 %v2330, 0.0
  %v2395 = vmax.f32 %v2331, 0.0
  %v2396 = vmax.f32 %v2332, 0.0
  %v2397 = vmax.f32 %v2333, 0.0
  %v2398 = vmax.f32 %v2334, 0.0
  %v2399 = vmax.f32 %v2335, 0.0
  %v2400 = vmax.f32 %v2336, 0.0
  %v2401 = vmax.f32 %v2337, 0.0
  %v2402 = vmax.f32 %v2338, 0.0
  %v2403 = vmax.f32 %v2339, 0.0
  %v2404 = vmax.f32 %v2340, 0.0
  %v2405 = vmax.f32 %v2341, 0.0
  %v2406 = vmax.f32 %v2342, 0.0
  %v2407 = vmax.f32 %v2343, 0.0
  %v2408 = vmax.f32 %v2344, 0.0
  %v2409 = vmax.f32 %v2345, 0.0
  %v2410 = vmax.f32 %v2346, 0.0
  %v2411 = vmax.f32 %v2347, 0.0
  %v2412 = vmax.f32 %v2348, 0.0
  %v2413 = vmax.f32 %v2349, 0.0
  %v2414 = vmax.f32 %v2350, 0.0
  %v2415 = vmax.f32 %v2351, 0.0
  %v2416 = vmax.f32 %v2352, 0.0
  %v2417 = vmax.f32 %v2353, 0.0
  %v2418 = vmax.f32 %v2354, 0.0
  %v2419 = vadd.f32 %v2355, %v887
  %v2420 = vadd.f32 %v2356, %v890
  %v2421 = vadd.f32 %v2357, %v893
  %v2422 = vadd.f32 %v2358, %v896
  %v2423 = vadd.f32 %v2359, %v899
  %v2424 = vadd.f32 %v2360, %v902
  %v2425 = vadd.f32 %v2361, %v905
  %v2426 = vadd.f32 %v2362, %v908
  %v2427 = vadd.f32 %v2363, %v911
  %v2428 = vadd.f32 %v2364, %v914
  %v2429 = vadd.f32 %v2365, %v917
  %v2430 = vadd.f32 %v2366, %v920
  %v2431 = vadd.f32 %v2367, %v923
  %v2432 = vadd.f32 %v2368, %v926
  %v2433 = vadd.f32 %v2369, %v929
  %v2434 = vadd.f32 %v2370, %v932
  %v2435 = vadd.f32 %v2371, %v935
  %v2436 = vadd.f32 %v2372, %v938
  %v2437 = vadd.f32 %v2373, %v941
  %v2438 = vadd.f32 %v2374, %v944
  %v2439 = vadd.f32 %v2375, %v947
  %v2440 = vadd.f32 %v2376, %v950
  %v2441 = vadd.f32 %v2377, %v953
  %v2442 = vadd.f32 %v2378, %v956
  %v2443 = vadd.f32 %v2379, %v959
  %v2444 = vadd.f32 %v2380, %v962
  %v2445 = vadd.f32 %v2381, %v965
  %v2446 = vadd.f32 %v2382, %v968
  %v2447 = vadd.f32 %v2383, %v971
  %v2448 = vadd.f32 %v2384, %v974
  %v2449 = vadd.f32 %v2385, %v977
  %v2450 = vadd.f32 %v2386, %v980
  %v2451 = vadd.f32 %v2387, %v983
  %v2452 = vadd.f32 %v2388, %v986
  %v2453 = vadd.f32 %v2389, %v989
  %v2454 = vadd.f32 %v2390, %v992
  %v2455 = vadd.f32 %v2391, %v995
  %v2456 = vadd.f32 %v2392, %v998
  %v2457 = vadd.f32 %v2393, %v1001
  %v2458 = vadd.f32 %v2394, %v1004
  %v2459 = vadd.f32 %v2395, %v1007
  %v2460 = vadd.f32 %v2396, %v1010
  %v2461 = vadd.f32 %v2397, %v1013
  %v2462 = vadd.f32 %v2398, %v1016
  %v2463 = vadd.f32 %v2399, %v1019
  %v2464 = vadd.f32 %v2400, %v1022
  %v2465 = vadd.f32 %v2401, %v1025
  %v2466 = vadd.f32 %v2402, %v1028
  %v2467 = vadd.f32 %v2403, %v1031
  %v2468 = vadd.f32 %v2404, %v1034
  %v2469 = vadd.f32 %v2405, %v1037
  %v2470 = vadd.f32 %v2406, %v1040
  %v2471 = vadd.f32 %v2407, %v1043
  %v2472 = vadd.f32 %v2408, %v1046
  %v2473 = vadd.f32 %v2409, %v1049
  %v2474 = vadd.f32 %v2410, %v1052
  %v2475 = vadd.f32 %v2411, %v1055
  %v2476 = vadd.f32 %v2412, %v1058
  %v2477 = vadd.f32 %v2413, %v1061
  %v2478 = vadd.f32 %v2414, %v1064
  %v2479 = vadd.f32 %v2415, %v1067
  %v2480 = vadd.f32 %v2416, %v1070
  %v2481 = vadd.f32 %v2417, %v1073
  %v2482 = vadd.f32 %v2418, %v1076
  %v2484 = vrot.slane %v1930, 1
  %v2487 = vrot.slane %v1956, 1
  %v2489 = vadd.f32 %v2419, %v2420
  %v2490 = vadd.f32 %v2489, %v2421
  %v2491 = vadd.f32 %v2490, %v2422
  %v2492 = vadd.f32 %v2491, %v2423
  %v2493 = vadd.f32 %v2492, %v2424
  %v2494 = vadd.f32 %v2493, %v2425
  %v2495 = vadd.f32 %v2494, %v2426
  %v2496 = vadd.f32 %v2495, %v2427
  %v2497 = vadd.f32 %v2496, %v2428
  %v2498 = vadd.f32 %v2497, %v2429
  %v2499 = vadd.f32 %v2498, %v2430
  %v2500 = vadd.f32 %v2499, %v2431
  %v2501 = vadd.f32 %v2500, %v2432
  %v2502 = vadd.f32 %v2501, %v2433
  %v2503 = vadd.f32 %v2502, %v2434
  %v2504 = vadd.f32 %v2503, %v2435
  %v2505 = vadd.f32 %v2504, %v2436
  %v2506 = vadd.f32 %v2505, %v2437
  %v2507 = vadd.f32 %v2506, %v2438
  %v2508 = vadd.f32 %v2507, %v2439
  %v2509 = vadd.f32 %v2508, %v2440
  %v2510 = vadd.f32 %v2509, %v2441
  %v2511 = vadd.f32 %v2510, %v2442
  %v2512 = vadd.f32 %v2511, %v2443
  %v2513 = vadd.f32 %v2512, %v2444
  %v2514 = vadd.f32 %v2513, %v2445
  %v2515 = vadd.f32 %v2514, %v2446
  %v2516 = vadd.f32 %v2515, %v2447
  %v2517 = vadd.f32 %v2516, %v2448
  %v2518 = vadd.f32 %v2517, %v2449
  %v2519 = vadd.f32 %v2518, %v2450
  %v2520 = vrot.slane %v2519, 4
  %v2521 = vadd.f32 %v2519, %v2520
  %v2522 = vrot.slane %v2521, 2
  %v2523 = vadd.f32 %v2521, %v2522
  %v2524 = vrot.slane %v2523, 1
  %v2525 = vadd.f32 %v2523, %v2524
  %v2526 = vadd.f32 %v2451, %v2452
  %v2527 = vadd.f32 %v2526, %v2453
  %v2528 = vadd.f32 %v2527, %v2454
  %v2529 = vadd.f32 %v2528, %v2455
  %v2530 = vadd.f32 %v2529, %v2456
  %v2531 = vadd.f32 %v2530, %v2457
  %v2532 = vadd.f32 %v2531, %v2458
  %v2533 = vadd.f32 %v2532, %v2459
  %v2534 = vadd.f32 %v2533, %v2460
  %v2535 = vadd.f32 %v2534, %v2461
  %v2536 = vadd.f32 %v2535, %v2462
  %v2537 = vadd.f32 %v2536, %v2463
  %v2538 = vadd.f32 %v2537, %v2464
  %v2539 = vadd.f32 %v2538, %v2465
  %v2540 = vadd.f32 %v2539, %v2466
  %v2541 = vadd.f32 %v2540, %v2467
  %v2542 = vadd.f32 %v2541, %v2468
  %v2543 = vadd.f32 %v2542, %v2469
  %v2544 = vadd.f32 %v2543, %v2470
  %v2545 = vadd.f32 %v2544, %v2471
  %v2546 = vadd.f32 %v2545, %v2472
  %v2547 = vadd.f32 %v2546, %v2473
  %v2548 = vadd.f32 %v2547, %v2474
  %v2549 = vadd.f32 %v2548, %v2475
  %v2550 = vadd.f32 %v2549, %v2476
  %v2551 = vadd.f32 %v2550, %v2477
  %v2552 = vadd.f32 %v2551, %v2478
  %v2553 = vadd.f32 %v2552, %v2479
  %v2554 = vadd.f32 %v2553, %v2480
  %v2555 = vadd.f32 %v2554, %v2481
  %v2556 = vadd.f32 %v2555, %v2482
  %v2557 = vrot.slane %v2556, 4
  %v2558 = vadd.f32 %v2556, %v2557
  %v2559 = vrot.slane %v2558, 2
  %v2560 = vadd.f32 %v2558, %v2559
  %v2561 = vrot.slane %v2560, 1
  %v2562 = vadd.f32 %v2560, %v2561
  %v2563 = vmul.f32 %v2525, 0.00390625
  %v2564 = vmul.f32 %v2562, 0.00390625
  %v2565 = vmul.f32 %v2419, %v2419
  %v2566 = vmul.f32 %v2420, %v2420
  %v2567 = vmul.f32 %v2421, %v2421
  %v2568 = vmul.f32 %v2422, %v2422
  %v2569 = vmul.f32 %v2423, %v2423
  %v2570 = vmul.f32 %v2424, %v2424
  %v2571 = vmul.f32 %v2425, %v2425
  %v2572 = vmul.f32 %v2426, %v2426
  %v2573 = vmul.f32 %v2427, %v2427
  %v2574 = vmul.f32 %v2428, %v2428
  %v2575 = vmul.f32 %v2429, %v2429
  %v2576 = vmul.f32 %v2430, %v2430
  %v2577 = vmul.f32 %v2431, %v2431
  %v2578 = vmul.f32 %v2432, %v2432
  %v2579 = vmul.f32 %v2433, %v2433
  %v2580 = vmul.f32 %v2434, %v2434
  %v2581 = vmul.f32 %v2435, %v2435
  %v2582 = vmul.f32 %v2436, %v2436
  %v2583 = vmul.f32 %v2437, %v2437
  %v2584 = vmul.f32 %v2438, %v2438
  %v2585 = vmul.f32 %v2439, %v2439
  %v2586 = vmul.f32 %v2440, %v2440
  %v2587 = vmul.f32 %v2441, %v2441
  %v2588 = vmul.f32 %v2442, %v2442
  %v2589 = vmul.f32 %v2443, %v2443
  %v2590 = vmul.f32 %v2444, %v2444
  %v2591 = vmul.f32 %v2445, %v2445
  %v2592 = vmul.f32 %v2446, %v2446
  %v2593 = vmul.f32 %v2447, %v2447
  %v2594 = vmul.f32 %v2448, %v2448
  %v2595 = vmul.f32 %v2449, %v2449
  %v2596 = vmul.f32 %v2450, %v2450
  %v2597 = vmul.f32 %v2451, %v2451
  %v2598 = vmul.f32 %v2452, %v2452
  %v2599 = vmul.f32 %v2453, %v2453
  %v2600 = vmul.f32 %v2454, %v2454
  %v2601 = vmul.f32 %v2455, %v2455
  %v2602 = vmul.f32 %v2456, %v2456
  %v2603 = vmul.f32 %v2457, %v2457
  %v2604 = vmul.f32 %v2458, %v2458
  %v2605 = vmul.f32 %v2459, %v2459
  %v2606 = vmul.f32 %v2460, %v2460
  %v2607 = vmul.f32 %v2461, %v2461
  %v2608 = vmul.f32 %v2462, %v2462
  %v2609 = vmul.f32 %v2463, %v2463
  %v2610 = vmul.f32 %v2464, %v2464
  %v2611 = vmul.f32 %v2465, %v2465
  %v2612 = vmul.f32 %v2466, %v2466
  %v2613 = vmul.f32 %v2467, %v2467
  %v2614 = vmul.f32 %v2468, %v2468
  %v2615 = vmul.f32 %v2469, %v2469
  %v2616 = vmul.f32 %v2470, %v2470
  %v2617 = vmul.f32 %v2471, %v2471
  %v2618 = vmul.f32 %v2472, %v2472
  %v2619 = vmul.f32 %v2473, %v2473
  %v2620 = vmul.f32 %v2474, %v2474
  %v2621 = vmul.f32 %v2475, %v2475
  %v2622 = vmul.f32 %v2476, %v2476
  %v2623 = vmul.f32 %v2477, %v2477
  %v2624 = vmul.f32 %v2478, %v2478
  %v2625 = vmul.f32 %v2479, %v2479
  %v2626 = vmul.f32 %v2480, %v2480
  %v2627 = vmul.f32 %v2481, %v2481
  %v2628 = vmul.f32 %v2482, %v2482
  %v2629 = vadd.f32 %v2565, %v2566
  %v2630 = vadd.f32 %v2629, %v2567
  %v2631 = vadd.f32 %v2630, %v2568
  %v2632 = vadd.f32 %v2631, %v2569
  %v2633 = vadd.f32 %v2632, %v2570
  %v2634 = vadd.f32 %v2633, %v2571
  %v2635 = vadd.f32 %v2634, %v2572
  %v2636 = vadd.f32 %v2635, %v2573
  %v2637 = vadd.f32 %v2636, %v2574
  %v2638 = vadd.f32 %v2637, %v2575
  %v2639 = vadd.f32 %v2638, %v2576
  %v2640 = vadd.f32 %v2639, %v2577
  %v2641 = vadd.f32 %v2640, %v2578
  %v2642 = vadd.f32 %v2641, %v2579
  %v2643 = vadd.f32 %v2642, %v2580
  %v2644 = vadd.f32 %v2643, %v2581
  %v2645 = vadd.f32 %v2644, %v2582
  %v2646 = vadd.f32 %v2645, %v2583
  %v2647 = vadd.f32 %v2646, %v2584
  %v2648 = vadd.f32 %v2647, %v2585
  %v2649 = vadd.f32 %v2648, %v2586
  %v2650 = vadd.f32 %v2649, %v2587
  %v2651 = vadd.f32 %v2650, %v2588
  %v2652 = vadd.f32 %v2651, %v2589
  %v2653 = vadd.f32 %v2652, %v2590
  %v2654 = vadd.f32 %v2653, %v2591
  %v2655 = vadd.f32 %v2654, %v2592
  %v2656 = vadd.f32 %v2655, %v2593
  %v2657 = vadd.f32 %v2656, %v2594
  %v2658 = vadd.f32 %v2657, %v2595
  %v2659 = vadd.f32 %v2658, %v2596
  %v2660 = vrot.slane %v2659, 4
  %v2661 = vadd.f32 %v2659, %v2660
  %v2662 = vrot.slane %v2661, 2
  %v2663 = vadd.f32 %v2661, %v2662
  %v2664 = vrot.slane %v2663, 1
  %v2665 = vadd.f32 %v2663, %v2664
  %v2666 = vadd.f32 %v2597, %v2598
  %v2667 = vadd.f32 %v2666, %v2599
  %v2668 = vadd.f32 %v2667, %v2600
  %v2669 = vadd.f32 %v2668, %v2601
  %v2670 = vadd.f32 %v2669, %v2602
  %v2671 = vadd.f32 %v2670, %v2603
  %v2672 = vadd.f32 %v2671, %v2604
  %v2673 = vadd.f32 %v2672, %v2605
  %v2674 = vadd.f32 %v2673, %v2606
  %v2675 = vadd.f32 %v2674, %v2607
  %v2676 = vadd.f32 %v2675, %v2608
  %v2677 = vadd.f32 %v2676, %v2609
  %v2678 = vadd.f32 %v2677, %v2610
  %v2679 = vadd.f32 %v2678, %v2611
  %v2680 = vadd.f32 %v2679, %v2612
  %v2681 = vadd.f32 %v2680, %v2613
  %v2682 = vadd.f32 %v2681, %v2614
  %v2683 = vadd.f32 %v2682, %v2615
  %v2684 = vadd.f32 %v2683, %v2616
  %v2685 = vadd.f32 %v2684, %v2617
  %v2686 = vadd.f32 %v2685, %v2618
  %v2687 = vadd.f32 %v2686, %v2619
  %v2688 = vadd.f32 %v2687, %v2620
  %v2689 = vadd.f32 %v2688, %v2621
  %v2690 = vadd.f32 %v2689, %v2622
  %v2691 = vadd.f32 %v2690, %v2623
  %v2692 = vadd.f32 %v2691, %v2624
  %v2693 = vadd.f32 %v2692, %v2625
  %v2694 = vadd.f32 %v2693, %v2626
  %v2695 = vadd.f32 %v2694, %v2627
  %v2696 = vadd.f32 %v2695, %v2628
  %v2697 = vrot.slane %v2696, 4
  %v2698 = vadd.f32 %v2696, %v2697
  %v2699 = vrot.slane %v2698, 2
  %v2700 = vadd.f32 %v2698, %v2699
  %v2701 = vrot.slane %v2700, 1
  %v2702 = vadd.f32 %v2700, %v2701
  %v2703 = vmul.f32 %v2665, 0.00390625
  %v2704 = vmul.f32 %v2702, 0.00390625
  %v2705 = vmul.f32 %v2563, %v2563
  %v2706 = vmul.f32 %v2564, %v2564
  %v2707 = vsub.f32 %v2703, %v2705
  %v2708 = vsub.f32 %v2704, %v2706
  %v2709 = vmax.f32 %v2707, 0.0
  %v2710 = vmax.f32 %v2708, 0.0
  %v2711 = vadd.f32 %v2709, 1e-05
  %v2712 = vadd.f32 %v2710, 1e-05
  %v2713 = vrsqrt.pop %v2711
  %v2714 = vmul.f32 %v2713, %v2711
  %v2715 = vmul.f32 %v2714, %v2713
  %v2716 = vmul.f32 0.5, %v2715
  %v2717 = vsub.f32 1.5, %v2716
  %v2718 = vmul.f32 %v2713, %v2717
  %vm2719 = vweird.f32 %v2711
  %vm2720 = vweird.f32 %v2713
  %vm2721 = vmor %vm2719, %vm2720
  %v2722 = vsel %vm2721, %v2713, %v2718
  %v2723 = vrsqrt.pop %v2712
  %v2724 = vmul.f32 %v2723, %v2712
  %v2725 = vmul.f32 %v2724, %v2723
  %v2726 = vmul.f32 0.5, %v2725
  %v2727 = vsub.f32 1.5, %v2726
  %v2728 = vmul.f32 %v2723, %v2727
  %vm2729 = vweird.f32 %v2712
  %vm2730 = vweird.f32 %v2723
  %vm2731 = vmor %vm2729, %vm2730
  %v2732 = vsel %vm2731, %v2723, %v2728
  %v2733 = vmul.f32 %v1956, %v2722
  %v2734 = vmul.f32 %v2487, %v2732
  %v2735 = vmul.f32 %v2563, %v2733
  %v2736 = vmul.f32 %v2564, %v2734
  %v2737 = vsub.f32 %v1930, %v2735
  %v2738 = vsub.f32 %v2484, %v2736
  %v2741 = vperm.slane %v2733, 0
  %v2742 = vperm.slane %v2734, 0
  %v2745 = vmul.f32 %v2419, %v2741
  %v2746 = vmul.f32 %v2420, %v2741
  %v2747 = vmul.f32 %v2421, %v2741
  %v2748 = vmul.f32 %v2422, %v2741
  %v2749 = vmul.f32 %v2423, %v2741
  %v2750 = vmul.f32 %v2424, %v2741
  %v2751 = vmul.f32 %v2425, %v2741
  %v2752 = vmul.f32 %v2426, %v2741
  %v2753 = vmul.f32 %v2427, %v2741
  %v2754 = vmul.f32 %v2428, %v2741
  %v2755 = vmul.f32 %v2429, %v2741
  %v2756 = vmul.f32 %v2430, %v2741
  %v2757 = vmul.f32 %v2431, %v2741
  %v2758 = vmul.f32 %v2432, %v2741
  %v2759 = vmul.f32 %v2433, %v2741
  %v2760 = vmul.f32 %v2434, %v2741
  %v2761 = vmul.f32 %v2435, %v2741
  %v2762 = vmul.f32 %v2436, %v2741
  %v2763 = vmul.f32 %v2437, %v2741
  %v2764 = vmul.f32 %v2438, %v2741
  %v2765 = vmul.f32 %v2439, %v2741
  %v2766 = vmul.f32 %v2440, %v2741
  %v2767 = vmul.f32 %v2441, %v2741
  %v2768 = vmul.f32 %v2442, %v2741
  %v2769 = vmul.f32 %v2443, %v2741
  %v2770 = vmul.f32 %v2444, %v2741
  %v2771 = vmul.f32 %v2445, %v2741
  %v2772 = vmul.f32 %v2446, %v2741
  %v2773 = vmul.f32 %v2447, %v2741
  %v2774 = vmul.f32 %v2448, %v2741
  %v2775 = vmul.f32 %v2449, %v2741
  %v2776 = vmul.f32 %v2450, %v2741
  %v2777 = vmul.f32 %v2451, %v2742
  %v2778 = vmul.f32 %v2452, %v2742
  %v2779 = vmul.f32 %v2453, %v2742
  %v2780 = vmul.f32 %v2454, %v2742
  %v2781 = vmul.f32 %v2455, %v2742
  %v2782 = vmul.f32 %v2456, %v2742
  %v2783 = vmul.f32 %v2457, %v2742
  %v2784 = vmul.f32 %v2458, %v2742
  %v2785 = vmul.f32 %v2459, %v2742
  %v2786 = vmul.f32 %v2460, %v2742
  %v2787 = vmul.f32 %v2461, %v2742
  %v2788 = vmul.f32 %v2462, %v2742
  %v2789 = vmul.f32 %v2463, %v2742
  %v2790 = vmul.f32 %v2464, %v2742
  %v2791 = vmul.f32 %v2465, %v2742
  %v2792 = vmul.f32 %v2466, %v2742
  %v2793 = vmul.f32 %v2467, %v2742
  %v2794 = vmul.f32 %v2468, %v2742
  %v2795 = vmul.f32 %v2469, %v2742
  %v2796 = vmul.f32 %v2470, %v2742
  %v2797 = vmul.f32 %v2471, %v2742
  %v2798 = vmul.f32 %v2472, %v2742
  %v2799 = vmul.f32 %v2473, %v2742
  %v2800 = vmul.f32 %v2474, %v2742
  %v2801 = vmul.f32 %v2475, %v2742
  %v2802 = vmul.f32 %v2476, %v2742
  %v2803 = vmul.f32 %v2477, %v2742
  %v2804 = vmul.f32 %v2478, %v2742
  %v2805 = vmul.f32 %v2479, %v2742
  %v2806 = vmul.f32 %v2480, %v2742
  %v2807 = vmul.f32 %v2481, %v2742
  %v2808 = vmul.f32 %v2482, %v2742
  %v2811 = vperm.slane %v2737, 0
  %v2812 = vperm.slane %v2738, 0
  %v2815 = vadd.f32 %v2745, %v2811
  %v2816 = vadd.f32 %v2746, %v2811
  %v2817 = vadd.f32 %v2747, %v2811
  %v2818 = vadd.f32 %v2748, %v2811
  %v2819 = vadd.f32 %v2749, %v2811
  %v2820 = vadd.f32 %v2750, %v2811
  %v2821 = vadd.f32 %v2751, %v2811
  %v2822 = vadd.f32 %v2752, %v2811
  %v2823 = vadd.f32 %v2753, %v2811
  %v2824 = vadd.f32 %v2754, %v2811
  %v2825 = vadd.f32 %v2755, %v2811
  %v2826 = vadd.f32 %v2756, %v2811
  %v2827 = vadd.f32 %v2757, %v2811
  %v2828 = vadd.f32 %v2758, %v2811
  %v2829 = vadd.f32 %v2759, %v2811
  %v2830 = vadd.f32 %v2760, %v2811
  %v2831 = vadd.f32 %v2761, %v2811
  %v2832 = vadd.f32 %v2762, %v2811
  %v2833 = vadd.f32 %v2763, %v2811
  %v2834 = vadd.f32 %v2764, %v2811
  %v2835 = vadd.f32 %v2765, %v2811
  %v2836 = vadd.f32 %v2766, %v2811
  %v2837 = vadd.f32 %v2767, %v2811
  %v2838 = vadd.f32 %v2768, %v2811
  %v2839 = vadd.f32 %v2769, %v2811
  %v2840 = vadd.f32 %v2770, %v2811
  %v2841 = vadd.f32 %v2771, %v2811
  %v2842 = vadd.f32 %v2772, %v2811
  %v2843 = vadd.f32 %v2773, %v2811
  %v2844 = vadd.f32 %v2774, %v2811
  %v2845 = vadd.f32 %v2775, %v2811
  %v2846 = vadd.f32 %v2776, %v2811
  %v2847 = vadd.f32 %v2777, %v2812
  %v2848 = vadd.f32 %v2778, %v2812
  %v2849 = vadd.f32 %v2779, %v2812
  %v2850 = vadd.f32 %v2780, %v2812
  %v2851 = vadd.f32 %v2781, %v2812
  %v2852 = vadd.f32 %v2782, %v2812
  %v2853 = vadd.f32 %v2783, %v2812
  %v2854 = vadd.f32 %v2784, %v2812
  %v2855 = vadd.f32 %v2785, %v2812
  %v2856 = vadd.f32 %v2786, %v2812
  %v2857 = vadd.f32 %v2787, %v2812
  %v2858 = vadd.f32 %v2788, %v2812
  %v2859 = vadd.f32 %v2789, %v2812
  %v2860 = vadd.f32 %v2790, %v2812
  %v2861 = vadd.f32 %v2791, %v2812
  %v2862 = vadd.f32 %v2792, %v2812
  %v2863 = vadd.f32 %v2793, %v2812
  %v2864 = vadd.f32 %v2794, %v2812
  %v2865 = vadd.f32 %v2795, %v2812
  %v2866 = vadd.f32 %v2796, %v2812
  %v2867 = vadd.f32 %v2797, %v2812
  %v2868 = vadd.f32 %v2798, %v2812
  %v2869 = vadd.f32 %v2799, %v2812
  %v2870 = vadd.f32 %v2800, %v2812
  %v2871 = vadd.f32 %v2801, %v2812
  %v2872 = vadd.f32 %v2802, %v2812
  %v2873 = vadd.f32 %v2803, %v2812
  %v2874 = vadd.f32 %v2804, %v2812
  %v2875 = vadd.f32 %v2805, %v2812
  %v2876 = vadd.f32 %v2806, %v2812
  %v2877 = vadd.f32 %v2807, %v2812
  %v2878 = vadd.f32 %v2808, %v2812
  %v2879 = vmax.f32 %v2815, 0.0
  %v2880 = vmax.f32 %v2816, 0.0
  %v2881 = vmax.f32 %v2817, 0.0
  %v2882 = vmax.f32 %v2818, 0.0
  %v2883 = vmax.f32 %v2819, 0.0
  %v2884 = vmax.f32 %v2820, 0.0
  %v2885 = vmax.f32 %v2821, 0.0
  %v2886 = vmax.f32 %v2822, 0.0
  %v2887 = vmax.f32 %v2823, 0.0
  %v2888 = vmax.f32 %v2824, 0.0
  %v2889 = vmax.f32 %v2825, 0.0
  %v2890 = vmax.f32 %v2826, 0.0
  %v2891 = vmax.f32 %v2827, 0.0
  %v2892 = vmax.f32 %v2828, 0.0
  %v2893 = vmax.f32 %v2829, 0.0
  %v2894 = vmax.f32 %v2830, 0.0
  %v2895 = vmax.f32 %v2831, 0.0
  %v2896 = vmax.f32 %v2832, 0.0
  %v2897 = vmax.f32 %v2833, 0.0
  %v2898 = vmax.f32 %v2834, 0.0
  %v2899 = vmax.f32 %v2835, 0.0
  %v2900 = vmax.f32 %v2836, 0.0
  %v2901 = vmax.f32 %v2837, 0.0
  %v2902 = vmax.f32 %v2838, 0.0
  %v2903 = vmax.f32 %v2839, 0.0
  %v2904 = vmax.f32 %v2840, 0.0
  %v2905 = vmax.f32 %v2841, 0.0
  %v2906 = vmax.f32 %v2842, 0.0
  %v2907 = vmax.f32 %v2843, 0.0
  %v2908 = vmax.f32 %v2844, 0.0
  %v2909 = vmax.f32 %v2845, 0.0
  %v2910 = vmax.f32 %v2846, 0.0
  %v2911 = vmax.f32 %v2847, 0.0
  %v2912 = vmax.f32 %v2848, 0.0
  %v2913 = vmax.f32 %v2849, 0.0
  %v2914 = vmax.f32 %v2850, 0.0
  %v2915 = vmax.f32 %v2851, 0.0
  %v2916 = vmax.f32 %v2852, 0.0
  %v2917 = vmax.f32 %v2853, 0.0
  %v2918 = vmax.f32 %v2854, 0.0
  %v2919 = vmax.f32 %v2855, 0.0
  %v2920 = vmax.f32 %v2856, 0.0
  %v2921 = vmax.f32 %v2857, 0.0
  %v2922 = vmax.f32 %v2858, 0.0
  %v2923 = vmax.f32 %v2859, 0.0
  %v2924 = vmax.f32 %v2860, 0.0
  %v2925 = vmax.f32 %v2861, 0.0
  %v2926 = vmax.f32 %v2862, 0.0
  %v2927 = vmax.f32 %v2863, 0.0
  %v2928 = vmax.f32 %v2864, 0.0
  %v2929 = vmax.f32 %v2865, 0.0
  %v2930 = vmax.f32 %v2866, 0.0
  %v2931 = vmax.f32 %v2867, 0.0
  %v2932 = vmax.f32 %v2868, 0.0
  %v2933 = vmax.f32 %v2869, 0.0
  %v2934 = vmax.f32 %v2870, 0.0
  %v2935 = vmax.f32 %v2871, 0.0
  %v2936 = vmax.f32 %v2872, 0.0
  %v2937 = vmax.f32 %v2873, 0.0
  %v2938 = vmax.f32 %v2874, 0.0
  %v2939 = vmax.f32 %v2875, 0.0
  %v2940 = vmax.f32 %v2876, 0.0
  %v2941 = vmax.f32 %v2877, 0.0
  %v2942 = vmax.f32 %v2878, 0.0
  %v2943 = vadd.f32 %v2879, %v886
  %v2944 = vadd.f32 %v2880, %v889
  %v2945 = vadd.f32 %v2881, %v892
  %v2946 = vadd.f32 %v2882, %v895
  %v2947 = vadd.f32 %v2883, %v898
  %v2948 = vadd.f32 %v2884, %v901
  %v2949 = vadd.f32 %v2885, %v904
  %v2950 = vadd.f32 %v2886, %v907
  %v2951 = vadd.f32 %v2887, %v910
  %v2952 = vadd.f32 %v2888, %v913
  %v2953 = vadd.f32 %v2889, %v916
  %v2954 = vadd.f32 %v2890, %v919
  %v2955 = vadd.f32 %v2891, %v922
  %v2956 = vadd.f32 %v2892, %v925
  %v2957 = vadd.f32 %v2893, %v928
  %v2958 = vadd.f32 %v2894, %v931
  %v2959 = vadd.f32 %v2895, %v934
  %v2960 = vadd.f32 %v2896, %v937
  %v2961 = vadd.f32 %v2897, %v940
  %v2962 = vadd.f32 %v2898, %v943
  %v2963 = vadd.f32 %v2899, %v946
  %v2964 = vadd.f32 %v2900, %v949
  %v2965 = vadd.f32 %v2901, %v952
  %v2966 = vadd.f32 %v2902, %v955
  %v2967 = vadd.f32 %v2903, %v958
  %v2968 = vadd.f32 %v2904, %v961
  %v2969 = vadd.f32 %v2905, %v964
  %v2970 = vadd.f32 %v2906, %v967
  %v2971 = vadd.f32 %v2907, %v970
  %v2972 = vadd.f32 %v2908, %v973
  %v2973 = vadd.f32 %v2909, %v976
  %v2974 = vadd.f32 %v2910, %v979
  %v2975 = vadd.f32 %v2911, %v982
  %v2976 = vadd.f32 %v2912, %v985
  %v2977 = vadd.f32 %v2913, %v988
  %v2978 = vadd.f32 %v2914, %v991
  %v2979 = vadd.f32 %v2915, %v994
  %v2980 = vadd.f32 %v2916, %v997
  %v2981 = vadd.f32 %v2917, %v1000
  %v2982 = vadd.f32 %v2918, %v1003
  %v2983 = vadd.f32 %v2919, %v1006
  %v2984 = vadd.f32 %v2920, %v1009
  %v2985 = vadd.f32 %v2921, %v1012
  %v2986 = vadd.f32 %v2922, %v1015
  %v2987 = vadd.f32 %v2923, %v1018
  %v2988 = vadd.f32 %v2924, %v1021
  %v2989 = vadd.f32 %v2925, %v1024
  %v2990 = vadd.f32 %v2926, %v1027
  %v2991 = vadd.f32 %v2927, %v1030
  %v2992 = vadd.f32 %v2928, %v1033
  %v2993 = vadd.f32 %v2929, %v1036
  %v2994 = vadd.f32 %v2930, %v1039
  %v2995 = vadd.f32 %v2931, %v1042
  %v2996 = vadd.f32 %v2932, %v1045
  %v2997 = vadd.f32 %v2933, %v1048
  %v2998 = vadd.f32 %v2934, %v1051
  %v2999 = vadd.f32 %v2935, %v1054
  %v3000 = vadd.f32 %v2936, %v1057
  %v3001 = vadd.f32 %v2937, %v1060
  %v3002 = vadd.f32 %v2938, %v1063
  %v3003 = vadd.f32 %v2939, %v1066
  %v3004 = vadd.f32 %v2940, %v1069
  %v3005 = vadd.f32 %v2941, %v1072
  %v3006 = vadd.f32 %v2942, %v1075
  %v3007 = vld [vmem:[%s6] sm:$0xff]
  %v3008 = vld [vmem:[%s8] sm:$0xff]
  %3010 = vset.pattern.permute.xlu0 0
  %3011 = vperm.xlu0 %3010, %v3008
  %v3012 = vpop.permute.xlu0 %3011
  %3014 = vmatpush.xpose.msra.mxu0 %v2958
  %3015 = vmatpush.xpose.msra.mxu0 %v2957
  %3016 = vmatpush.xpose.msra.mxu0 %v2956
  %3017 = vmatpush.xpose.msra.mxu0 %v2955
  %3018 = vmatpush.xpose.msra.mxu0 %v2954
  %3019 = vmatpush.xpose.msra.mxu0 %v2953
  %3020 = vmatpush.xpose.msra.mxu0 %v2952
  %3021 = vmatpush.xpose.msra.mxu0 %v2951
  %3022 = vmatpush.xpose.msra.mxu0 %v2950
  %3023 = vmatpush.xpose.msra.mxu0 %v2949
  %3024 = vmatpush.xpose.msra.mxu0 %v2948
  %3025 = vmatpush.xpose.msra.mxu0 %v2947
  %3026 = vmatpush.xpose.msra.mxu0 %v2946
  %3027 = vmatpush.xpose.msra.mxu0 %v2945
  %3028 = vmatpush.xpose.msra.mxu0 %v2944
  %3029 = vmatpush.xpose.msra.mxu0 %v2943
  %3030 = vmatmul.f32.gmra.mxu0 %v3007
  %v3031 = vpop.f32.mrf.mxu0
  %v3032 = vadd.f32 %v3012, %v3031
  %3033 = vdwg.mxu0
  %3034 = vmatpush.xpose.msra.mxu0 %v2974
  %3035 = vmatpush.xpose.msra.mxu0 %v2973
  %3036 = vmatpush.xpose.msra.mxu0 %v2972
  %3037 = vmatpush.xpose.msra.mxu0 %v2971
  %3038 = vmatpush.xpose.msra.mxu0 %v2970
  %3039 = vmatpush.xpose.msra.mxu0 %v2969
  %3040 = vmatpush.xpose.msra.mxu0 %v2968
  %3041 = vmatpush.xpose.msra.mxu0 %v2967
  %3042 = vmatpush.xpose.msra.mxu0 %v2966
  %3043 = vmatpush.xpose.msra.mxu0 %v2965
  %3044 = vmatpush.xpose.msra.mxu0 %v2964
  %3045 = vmatpush.xpose.msra.mxu0 %v2963
  %3046 = vmatpush.xpose.msra.mxu0 %v2962
  %3047 = vmatpush.xpose.msra.mxu0 %v2961
  %3048 = vmatpush.xpose.msra.mxu0 %v2960
  %3049 = vmatpush.xpose.msra.mxu0 %v2959
  %3050 = vmatmul.f32.gmra.mxu0 %v3007
  %v3051 = vpop.f32.mrf.mxu0
  %v3052 = vadd.f32 %v3012, %v3051
  %3053 = vdwg.mxu0
  %3054 = vmatpush.xpose.msra.mxu0 %v2990
  %3055 = vmatpush.xpose.msra.mxu0 %v2989
  %3056 = vmatpush.xpose.msra.mxu0 %v2988
  %3057 = vmatpush.xpose.msra.mxu0 %v2987
  %3058 = vmatpush.xpose.msra.mxu0 %v2986
  %3059 = vmatpush.xpose.msra.mxu0 %v2985
  %3060 = vmatpush.xpose.msra.mxu0 %v2984
  %3061 = vmatpush.xpose.msra.mxu0 %v2983
  %3062 = vmatpush.xpose.msra.mxu0 %v2982
  %3063 = vmatpush.xpose.msra.mxu0 %v2981
  %3064 = vmatpush.xpose.msra.mxu0 %v2980
  %3065 = vmatpush.xpose.msra.mxu0 %v2979
  %3066 = vmatpush.xpose.msra.mxu0 %v2978
  %3067 = vmatpush.xpose.msra.mxu0 %v2977
  %3068 = vmatpush.xpose.msra.mxu0 %v2976
  %3069 = vmatpush.xpose.msra.mxu0 %v2975
  %3070 = vmatmul.f32.gmra.mxu0 %v3007
  %v3071 = vpop.f32.mrf.mxu0
  %v3072 = vadd.f32 %v3012, %v3071
  %3073 = vdwg.mxu0
  %3074 = vmatpush.xpose.msra.mxu0 %v3006
  %3075 = vmatpush.xpose.msra.mxu0 %v3005
  %3076 = vmatpush.xpose.msra.mxu0 %v3004
  %3077 = vmatpush.xpose.msra.mxu0 %v3003
  %3078 = vmatpush.xpose.msra.mxu0 %v3002
  %3079 = vmatpush.xpose.msra.mxu0 %v3001
  %3080 = vmatpush.xpose.msra.mxu0 %v3000
  %3081 = vmatpush.xpose.msra.mxu0 %v2999
  %3082 = vmatpush.xpose.msra.mxu0 %v2998
  %3083 = vmatpush.xpose.msra.mxu0 %v2997
  %3084 = vmatpush.xpose.msra.mxu0 %v2996
  %3085 = vmatpush.xpose.msra.mxu0 %v2995
  %3086 = vmatpush.xpose.msra.mxu0 %v2994
  %3087 = vmatpush.xpose.msra.mxu0 %v2993
  %3088 = vmatpush.xpose.msra.mxu0 %v2992
  %3089 = vmatpush.xpose.msra.mxu0 %v2991
  %3090 = vmatmul.f32.gmra.mxu0 %v3007
  %v3091 = vpop.f32.mrf.mxu0
  %v3092 = vadd.f32 %v3012, %v3091
  %3093 = vdwg.mxu0
  %3094 = vst [vmem:[%s9] sm:$0xff] %v3032
  %3095 = vst [vmem:[%s9 + $0x8] sm:$0xff] %v3052
  %3096 = vst [vmem:[%s9 + $0x10] sm:$0xff] %v3072
  %3097 = vst [vmem:[%s9 + $0x18] sm:$0xff] %v3092
  // Predicated region
  $region38: #{base_generator_forward.1} parent=0 // pred_check
    _
  $region39: #{base_generator_forward.1} parent=0 // pred_check_branch
    %3099 = sbr.rel (0) target = $region41
  $region40: #{base_generator_forward.1} parent=0 // pred_region
    _
  $region41: #{base_generator_forward.1} parent=0 // pred_fallthru
    _
  // Predicated region
  $region42: #{base_generator_forward.1} parent=0 // pred_check
    _
  $region43: #{base_generator_forward.1} parent=0 // pred_check_branch
    %3101 = sbr.rel (0) target = $region45
  $region44: #{base_generator_forward.1} parent=0 // pred_region
    _
  $region45: #{base_generator_forward.1} parent=0 // pred_fallthru
    _

</llo_original>
